<compile_context>
chip_gen: v7x
topology: tpu7x:2x2x1
jax: 0.10.0
libtpu: 0.0.40
codegen_flags: <defaults>
</compile_context>

<pallas_src>
import functools

import jax
import jax.numpy as jnp
from jax.experimental import pallas as pl
from jax.experimental.pallas import tpu as pltpu


def _attention_aggregator_kernel(
    x_ref,        # (1, S, H)        f32   current batch element
    wqkv_ref,     # (1, 3, H, hd)    bf16  per-head Wq^T/Wk^T/Wv^T (scale folded into q)
    bqkv_ref,     # (1, 3, 1, hd)    f32   per-head bq/bk/bv (scale folded into bq)
    woT_ref,      # (1, hd, H)       bf16  per-head slice of out_proj.weight^T
    bo_ref,       # (1, H)           f32   out_proj.bias
    gamma_ref,    # (1, H)           f32   LayerNorm weight
    beta_ref,     # (1, H)           f32   LayerNorm bias
    wred_ref,     # (S_out, S)       bf16  reduce_seq_length.weight
    bred_ref,     # (S_out, 1)       f32   reduce_seq_length.bias
    out_ref,      # (1, S_out, H)    f32
    xbf_ref,      # VMEM (S, H)   bf16 scratch: x cached in bf16 across heads
    oacc_ref,     # VMEM (S, H)   f32  scratch: out-projection accumulator
    kbuf_ref,     # VMEM (S, hd)  bf16 scratch: K for the current head
    vbuf_ref,     # VMEM (S, hd)  bf16 scratch: V for the current head
    *,
    num_kv_tiles: int,
    kv_tile: int,
):
    h = pl.program_id(1)
    last_h = pl.num_programs(1) - 1

    # Per-batch init (runs once, on the first head of each batch element).
    @pl.when(h == 0)
    def _init():
        xbf_ref[...] = x_ref[0].astype(jnp.bfloat16)
        # out_proj bias is added exactly once, at accumulator init.
        oacc_ref[...] = jnp.zeros(oacc_ref.shape, jnp.float32) + bo_ref[...]

    x_bf = xbf_ref[...]                                   # (S, H) bf16

    # Per-head QKV projections: bf16 operands, f32 accumulation.
    # (1/sqrt(hd) already folded into the q weights/bias.)
    q = jnp.dot(x_bf, wqkv_ref[0, 0], preferred_element_type=jnp.float32) + bqkv_ref[0, 0]
    k = jnp.dot(x_bf, wqkv_ref[0, 1], preferred_element_type=jnp.float32) + bqkv_ref[0, 1]
    v = jnp.dot(x_bf, wqkv_ref[0, 2], preferred_element_type=jnp.float32) + bqkv_ref[0, 2]
    q_bf = q.astype(jnp.bfloat16)                         # (S, hd)
    kbuf_ref[...] = k.astype(jnp.bfloat16)
    vbuf_ref[...] = v.astype(jnp.bfloat16)

    S, hd = q.shape

    if num_kv_tiles == 1:
        # Static fast path: whole KV range fits one tile -> plain softmax,
        # no running-max rescale / accumulator carry.
        s = jax.lax.dot_general(q_bf, kbuf_ref[...], (((1,), (1,)), ((), ())),
                                preferred_element_type=jnp.float32)      # (S, S)
        m = jnp.max(s, axis=-1, keepdims=True)
        p = jnp.exp(s - m)
        l_f = jnp.sum(p, axis=-1, keepdims=True)
        acc_f = jnp.dot(p.astype(jnp.bfloat16), vbuf_ref[...],
                        preferred_element_type=jnp.float32)              # (S, hd)
    else:
        # Flash-style online softmax over KV tiles: never materializes (S, S).
        def kv_step(t, carry):
            m_i, l_i, acc = carry
            start = pl.multiple_of(t * kv_tile, kv_tile)
            k_t = kbuf_ref[pl.ds(start, kv_tile), :]      # (kv_tile, hd) bf16
            v_t = vbuf_ref[pl.ds(start, kv_tile), :]
            # q . k^T without an explicit transpose: contract the hd axes.
            s = jax.lax.dot_general(q_bf, k_t, (((1,), (1,)), ((), ())),
                                    preferred_element_type=jnp.float32)  # (S, kv_tile)
            m_new = jnp.maximum(m_i, jnp.max(s, axis=-1, keepdims=True))
            alpha = jnp.exp(m_i - m_new)
            p = jnp.exp(s - m_new)
            l_new = alpha * l_i + jnp.sum(p, axis=-1, keepdims=True)
            acc_new = alpha * acc + jnp.dot(p.astype(jnp.bfloat16), v_t,
                                            preferred_element_type=jnp.float32)
            return m_new, l_new, acc_new

        m0 = jnp.full((S, 1), -jnp.inf, dtype=jnp.float32)
        l0 = jnp.zeros((S, 1), dtype=jnp.float32)
        a0 = jnp.zeros((S, hd), dtype=jnp.float32)
        _, l_f, acc_f = jax.lax.fori_loop(0, num_kv_tiles, kv_step, (m0, l0, a0),
                                          unroll=num_kv_tiles <= 4)

    # Normalize on the EUP (approx reciprocal) instead of a VALU divide.
    attn_h = acc_f * pl.reciprocal(l_f, approx=True)      # (S, hd) f32

    # Accumulate this head's contribution to the output projection.
    oacc_ref[...] += jnp.dot(attn_h.astype(jnp.bfloat16), woT_ref[0],
                             preferred_element_type=jnp.float32)

    # Epilogue on the last head: LayerNorm + fused seq-length reduction.
    @pl.when(h == last_h)
    def _finalize():
        o = oacc_ref[...]                                 # (S, H) f32
        mean = jnp.mean(o, axis=-1, keepdims=True)
        var = jnp.mean(jnp.square(o - mean), axis=-1, keepdims=True)
        ln = (o - mean) * jax.lax.rsqrt(var + 1e-5)
        ln = ln * gamma_ref[...] + beta_ref[...]          # (S, H) f32
        # out[o, j] = sum_s W_red[o, s] * ln[s, j] + b_red[o]
        out = jnp.dot(wred_ref[...], ln.astype(jnp.bfloat16),
                      preferred_element_type=jnp.float32) + bred_ref[...]
        out_ref[0] = out.astype(out_ref.dtype)


def attention_aggregator(x, kparams, num_heads, kv_tile=None):
    B, S, H = x.shape
    assert H % num_heads == 0, "hidden_size must be divisible by num_heads"
    hd = H // num_heads
    S_out = kparams["w_red"].shape[0]

    if kv_tile is None:
        kv_tile = next((c for c in (512, 256, 128, 64, 32, 16, 8) if S % c == 0), S)
    assert S % kv_tile == 0, (S, kv_tile)
    num_kv_tiles = S // kv_tile

    kernel = functools.partial(_attention_aggregator_kernel,
                               num_kv_tiles=num_kv_tiles, kv_tile=kv_tile)

    in_specs = [
        pl.BlockSpec((1, S, H), lambda b, h: (b, 0, 0)),          # x (resident per batch)
        pl.BlockSpec((1, 3, H, hd), lambda b, h: (h, 0, 0, 0)),   # per-head QKV weights
        pl.BlockSpec((1, 3, 1, hd), lambda b, h: (h, 0, 0, 0)),   # per-head QKV biases
        pl.BlockSpec((1, hd, H), lambda b, h: (h, 0, 0)),         # per-head out-proj slice
        pl.BlockSpec((1, H), lambda b, h: (0, 0)),                # bo
        pl.BlockSpec((1, H), lambda b, h: (0, 0)),                # gamma
        pl.BlockSpec((1, H), lambda b, h: (0, 0)),                # beta
        pl.BlockSpec((S_out, S), lambda b, h: (0, 0)),            # W_red
        pl.BlockSpec((S_out, 1), lambda b, h: (0, 0)),            # b_red
    ]
    out_spec = pl.BlockSpec((1, S_out, H), lambda b, h: (b, 0, 0))

    scratch = [
        pltpu.VMEM((S, H), jnp.bfloat16),    # x in bf16, cached across heads
        pltpu.VMEM((S, H), jnp.float32),     # out-projection accumulator
        pltpu.VMEM((S, hd), jnp.bfloat16),   # K (current head)
        pltpu.VMEM((S, hd), jnp.bfloat16),   # V (current head)
    ]

    flops = int(B * (8 * S * H * H + 4 * S * S * H + 2 * S_out * S * H))
    transcendentals = int(B * num_heads * S * S)
    bytes_accessed = int(4 * B * S * H + 4 * B * S_out * H
                         + B * 2 * (3 * H * H + H * H + S_out * S)
                         + 4 * (8 * H + S_out))

    return pl.pallas_call(
        kernel,
        out_shape=jax.ShapeDtypeStruct((B, S_out, H), jnp.float32),
        grid_spec=pltpu.PrefetchScalarGridSpec(
            num_scalar_prefetch=0,
            grid=(B, num_heads),
            in_specs=in_specs,
            out_specs=out_spec,
            scratch_shapes=scratch,
        ),
        compiler_params=pltpu.CompilerParams(
            dimension_semantics=("parallel", "arbitrary"),
            vmem_limit_bytes=48 * 1024 * 1024,   # fits v7x's 64 MiB physical VMEM
        ),
        cost_estimate=pl.CostEstimate(flops=flops,
                                      transcendentals=transcendentals,
                                      bytes_accessed=bytes_accessed),
    )(
        x,
        kparams["wqkv_heads"], kparams["bqkv_heads"], kparams["woT_heads"],
        kparams["bo"], kparams["gamma"], kparams["beta"],
        kparams["w_red"], kparams["b_red"],
    )


# ----------------------------------------------------------------------------
# Parameter handling (PyTorch-layout params -> kernel layout) and reference.
# ----------------------------------------------------------------------------
def init_params(key, hidden_size, seq_len, out_seq_len):
    """Raw parameters with the exact nn.MultiheadAttention / LayerNorm / Linear shapes."""
    H, S, So = hidden_size, seq_len, out_seq_len
    ks = jax.random.split(key, 6)
    return {
        "in_proj_w": jax.random.normal(ks[0], (3 * H, H), jnp.float32) * 0.05,
        "in_proj_b": jax.random.normal(ks[1], (3 * H,), jnp.float32) * 0.05,
        "out_proj_w": jax.random.normal(ks[2], (H, H), jnp.float32) * 0.05,
        "out_proj_b": jax.random.normal(ks[3], (H,), jnp.float32) * 0.05,
        "ln_gamma": jnp.ones((H,), jnp.float32),
        "ln_beta": jnp.zeros((H,), jnp.float32),
        "red_w": jax.random.normal(ks[4], (So, S), jnp.float32) * 0.05,
        "red_b": jax.random.normal(ks[5], (So,), jnp.float32) * 0.05,
    }


def pack_params(p, num_heads):
    """Pre-split per head, fold 1/sqrt(hd) into Wq/bq, cast MXU weights to bf16."""
    H = p["out_proj_w"].shape[0]
    assert H % num_heads == 0
    hd = H // num_heads
    scale = 1.0 / float(hd) ** 0.5

    wq, wk, wv = p["in_proj_w"][:H], p["in_proj_w"][H:2 * H], p["in_proj_w"][2 * H:]
    bq, bk, bv = p["in_proj_b"][:H], p["in_proj_b"][H:2 * H], p["in_proj_b"][2 * H:]

    def heads_T(w):  # (H_out, H_in) Linear weight -> per-head W^T: (nh, H, hd)
        return w.T.reshape(H, num_heads, hd).transpose(1, 0, 2)

    wqkv_heads = jnp.stack(
        [heads_T(wq * scale), heads_T(wk), heads_T(wv)], axis=1
    ).astype(jnp.bfloat16)                                        # (nh, 3, H, hd)
    bqkv_heads = jnp.stack([bq * scale, bk, bv], axis=0).reshape(
        3, num_heads, 1, hd).transpose(1, 0, 2, 3)                # (nh, 3, 1, hd) f32
    woT_heads = p["out_proj_w"].T.reshape(num_heads, hd, H).astype(jnp.bfloat16)

    return {
        "wqkv_heads": wqkv_heads,
        "bqkv_heads": bqkv_heads,
        "woT_heads": woT_heads,
        "bo": p["out_proj_b"].reshape(1, H),
        "gamma": p["ln_gamma"].reshape(1, H),
        "beta": p["ln_beta"].reshape(1, H),
        "w_red": p["red_w"].astype(jnp.bfloat16),
        "b_red": p["red_b"].reshape(-1, 1),
    }


def reference_forward(x, p, num_heads):
    """Pure-JAX f32 reference mirroring the PyTorch module."""
    B, S, H = x.shape
    hd = H // num_heads
    scale = 1.0 / float(hd) ** 0.5
    wq, wk, wv = p["in_proj_w"][:H], p["in_proj_w"][H:2 * H], p["in_proj_w"][2 * H:]
    bq, bk, bv = p["in_proj_b"][:H], p["in_proj_b"][H:2 * H], p["in_proj_b"][2 * H:]

    q = x @ wq.T + bq
    k = x @ wk.T + bk
    v = x @ wv.T + bv

    def split(t):  # (B, S, H) -> (B, nh, S, hd)
        return t.reshape(B, S, num_heads, hd).transpose(0, 2, 1, 3)

    qh, kh, vh = split(q) * scale, split(k), split(v)
    s = jnp.einsum("bnqd,bnkd->bnqk", qh, kh)
    attn = jax.nn.softmax(s, axis=-1)
    o = jnp.einsum("bnqk,bnkd->bnqd", attn, vh)
    o = o.transpose(0, 2, 1, 3).reshape(B, S, H)
    o = o @ p["out_proj_w"].T + p["out_proj_b"]

    mean = jnp.mean(o, axis=-1, keepdims=True)
    var = jnp.mean((o - mean) ** 2, axis=-1, keepdims=True)
    ln = (o - mean) * jax.lax.rsqrt(var + 1e-5)
    ln = ln * p["ln_gamma"] + p["ln_beta"]

    t = ln.transpose(0, 2, 1)                       # (B, H, S)
    red = t @ p["red_w"].T + p["red_b"]             # (B, H, S_out)
    return red.transpose(0, 2, 1)                   # (B, S_out, H)


if __name__ == "__main__":
    # Small shapes consistent with the module's forward (S plays the role of
    # total_seq_length = 8*256 reduced to 256 in the original).
    B, S, H, num_heads, S_out = 2, 32, 32, 4, 8

    key = jax.random.PRNGKey(0)
    k_x, k_p = jax.random.split(key)
    x = jax.random.normal(k_x, (B, S, H), jnp.float32)
    raw = init_params(k_p, H, S, S_out)
    kparams = pack_params(raw, num_heads)

    # kv_tile=16 -> 2 online-softmax iterations, exercising the flash loop.
    out = attention_aggregator(x, kparams, num_heads, kv_tile=16)
    out = jax.block_until_ready(out)

    # Also exercise the static single-tile fast path.
    out_single = attention_aggregator(x, kparams, num_heads, kv_tile=S)
    out_single = jax.block_until_ready(out_single)

    ref = reference_forward(x, raw, num_heads)
    assert out.shape == (B, S_out, H), out.shape
    # bf16 MXU operands (f32 accumulation) -> loosened tolerance vs the f32 reference.
    max_err = float(jnp.max(jnp.abs(out - ref)))
    assert jnp.allclose(out, ref, atol=3e-2, rtol=3e-2), max_err
    max_err_single = float(jnp.max(jnp.abs(out_single - ref)))
    assert jnp.allclose(out_single, ref, atol=3e-2, rtol=3e-2), max_err_single

    print("KERNEL_OK")
</pallas_src>

<mosaic_0001>
module attributes {stable_mosaic.version = 11 : i64} {
  func.func @_attention_aggregator_kernel(%arg0: i32, %arg1: i32, %arg2: memref<1x32x32xf32, #tpu.memory_space<vmem>>, %arg3: memref<1x3x32x8xbf16, #tpu.memory_space<vmem>>, %arg4: memref<1x3x1x8xf32, #tpu.memory_space<vmem>>, %arg5: memref<1x8x32xbf16, #tpu.memory_space<vmem>>, %arg6: memref<1x32xf32, #tpu.memory_space<vmem>>, %arg7: memref<1x32xf32, #tpu.memory_space<vmem>>, %arg8: memref<1x32xf32, #tpu.memory_space<vmem>>, %arg9: memref<8x32xbf16, #tpu.memory_space<vmem>>, %arg10: memref<8x1xf32, #tpu.memory_space<vmem>>, %arg11: memref<1x8x32xf32, #tpu.memory_space<vmem>>, %arg12: memref<32x32xbf16, #tpu.memory_space<vmem>>, %arg13: memref<32x32xf32, #tpu.memory_space<vmem>>, %arg14: memref<32x8xbf16, #tpu.memory_space<vmem>>, %arg15: memref<32x8xbf16, #tpu.memory_space<vmem>>) attributes {dimension_semantics = [#tpu.dimension_semantics<parallel>, #tpu.dimension_semantics<arbitrary>], iteration_bounds = array<i64: 2, 4>, scalar_prefetch = 0 : i64, scratch_operands = 4 : i64, tpu.core_type = #tpu.core_type<tc>, window_params = [{transform_indices = @transform_0, window_bounds = array<i64: 1, 32, 32>}, {transform_indices = @transform_1, window_bounds = array<i64: 1, 3, 32, 8>}, {transform_indices = @transform_2, window_bounds = array<i64: 1, 3, 1, 8>}, {transform_indices = @transform_3, window_bounds = array<i64: 1, 8, 32>}, {pipeline_mode = #tpu.pipeline_mode<synchronous>, transform_indices = @transform_4, window_bounds = array<i64: 1, 32>}, {pipeline_mode = #tpu.pipeline_mode<synchronous>, transform_indices = @transform_5, window_bounds = array<i64: 1, 32>}, {pipeline_mode = #tpu.pipeline_mode<synchronous>, transform_indices = @transform_6, window_bounds = array<i64: 1, 32>}, {pipeline_mode = #tpu.pipeline_mode<synchronous>, transform_indices = @transform_7, window_bounds = array<i64: 8, 32>}, {pipeline_mode = #tpu.pipeline_mode<synchronous>, transform_indices = @transform_8, window_bounds = array<i64: 8, 1>}, {transform_indices = @transform_9, window_bounds = array<i64: 1, 8, 32>}]} {
    %c0_i32 = arith.constant 0 : i32
    %0 = arith.cmpi eq, %arg1, %c0_i32 : i32
    %1 = arith.extui %0 : i1 to i32
    %c0_i32_0 = arith.constant 0 : i32
    %2 = arith.cmpi ne, %1, %c0_i32_0 : i32
    scf.if %2 {
      %c0_56 = arith.constant 0 : index
      %c0_57 = arith.constant 0 : index
      %c0_58 = arith.constant 0 : index
      %94 = vector.load %arg2[%c0_56, %c0_57, %c0_58] : memref<1x32x32xf32, #tpu.memory_space<vmem>>, vector<1x32x32xf32>
      %95 = vector.shape_cast %94 : vector<1x32x32xf32> to vector<32x32xf32>
      %96 = arith.truncf %95 : vector<32x32xf32> to vector<32x32xbf16>
      %c0_59 = arith.constant 0 : index
      %c0_60 = arith.constant 0 : index
      %97 = vector.load %arg12[%c0_59, %c0_60] : memref<32x32xbf16, #tpu.memory_space<vmem>>, vector<32x32xbf16>
      tpu.vector_store %arg12[%c0_59, %c0_60], %96 {strides = array<i32>} : memref<32x32xbf16, #tpu.memory_space<vmem>>, vector<32x32xbf16>,
      %cst_61 = arith.constant 0.000000e+00 : f32
      %98 = vector.broadcast %cst_61 : f32 to vector<32x32xf32>
      %c0_62 = arith.constant 0 : index
      %c0_63 = arith.constant 0 : index
      %99 = vector.load %arg6[%c0_62, %c0_63] : memref<1x32xf32, #tpu.memory_space<vmem>>, vector<1x32xf32>
      %100 = vector.broadcast %99 : vector<1x32xf32> to vector<32x32xf32>
      %101 = arith.addf %98, %100 : vector<32x32xf32>
      %c0_64 = arith.constant 0 : index
      %c0_65 = arith.constant 0 : index
      %102 = vector.load %arg13[%c0_64, %c0_65] : memref<32x32xf32, #tpu.memory_space<vmem>>, vector<32x32xf32>
      tpu.vector_store %arg13[%c0_64, %c0_65], %101 {strides = array<i32>} : memref<32x32xf32, #tpu.memory_space<vmem>>, vector<32x32xf32>,
    } else {
    }
    %c0 = arith.constant 0 : index
    %c0_1 = arith.constant 0 : index
    %3 = vector.load %arg12[%c0, %c0_1] : memref<32x32xbf16, #tpu.memory_space<vmem>>, vector<32x32xbf16>
    %c0_2 = arith.constant 0 : index
    %c0_3 = arith.constant 0 : index
    %c0_4 = arith.constant 0 : index
    %c0_5 = arith.constant 0 : index
    %4 = vector.load %arg3[%c0_2, %c0_3, %c0_4, %c0_5] : memref<1x3x32x8xbf16, #tpu.memory_space<vmem>>, vector<1x1x32x8xbf16>
    %5 = vector.shape_cast %4 : vector<1x1x32x8xbf16> to vector<32x8xbf16>
    %cst = arith.constant dense<0.000000e+00> : vector<32x8xf32>
    %6 = tpu.matmul %3, %5, %cst {dimension_numbers = #tpu.dot_dimension_numbers<[1], [0], [0], [1], [0, 0, 1, 1], [], []>} : vector<32x32xbf16>, vector<32x8xbf16>, vector<32x8xf32> -> vector<32x8xf32>
    %c0_6 = arith.constant 0 : index
    %c0_7 = arith.constant 0 : index
    %c0_8 = arith.constant 0 : index
    %c0_9 = arith.constant 0 : index
    %7 = vector.load %arg4[%c0_6, %c0_7, %c0_8, %c0_9] : memref<1x3x1x8xf32, #tpu.memory_space<vmem>>, vector<1x1x1x8xf32>
    %8 = vector.shape_cast %7 : vector<1x1x1x8xf32> to vector<1x8xf32>
    %9 = vector.broadcast %8 : vector<1x8xf32> to vector<32x8xf32>
    %10 = arith.addf %6, %9 : vector<32x8xf32>
    %c0_10 = arith.constant 0 : index
    %c1 = arith.constant 1 : index
    %c0_11 = arith.constant 0 : index
    %c0_12 = arith.constant 0 : index
    %11 = vector.load %arg3[%c0_10, %c1, %c0_11, %c0_12] : memref<1x3x32x8xbf16, #tpu.memory_space<vmem>>, vector<1x1x32x8xbf16>
    %12 = vector.shape_cast %11 : vector<1x1x32x8xbf16> to vector<32x8xbf16>
    %cst_13 = arith.constant dense<0.000000e+00> : vector<32x8xf32>
    %13 = tpu.matmul %3, %12, %cst_13 {dimension_numbers = #tpu.dot_dimension_numbers<[1], [0], [0], [1], [0, 0, 1, 1], [], []>} : vector<32x32xbf16>, vector<32x8xbf16>, vector<32x8xf32> -> vector<32x8xf32>
    %c0_14 = arith.constant 0 : index
    %c1_15 = arith.constant 1 : index
    %c0_16 = arith.constant 0 : index
    %c0_17 = arith.constant 0 : index
    %14 = vector.load %arg4[%c0_14, %c1_15, %c0_16, %c0_17] : memref<1x3x1x8xf32, #tpu.memory_space<vmem>>, vector<1x1x1x8xf32>
    %15 = vector.shape_cast %14 : vector<1x1x1x8xf32> to vector<1x8xf32>
    %16 = vector.broadcast %15 : vector<1x8xf32> to vector<32x8xf32>
    %17 = arith.addf %13, %16 : vector<32x8xf32>
    %c0_18 = arith.constant 0 : index
    %c2 = arith.constant 2 : index
    %c0_19 = arith.constant 0 : index
    %c0_20 = arith.constant 0 : index
    %18 = vector.load %arg3[%c0_18, %c2, %c0_19, %c0_20] : memref<1x3x32x8xbf16, #tpu.memory_space<vmem>>, vector<1x1x32x8xbf16>
    %19 = vector.shape_cast %18 : vector<1x1x32x8xbf16> to vector<32x8xbf16>
    %cst_21 = arith.constant dense<0.000000e+00> : vector<32x8xf32>
    %20 = tpu.matmul %3, %19, %cst_21 {dimension_numbers = #tpu.dot_dimension_numbers<[1], [0], [0], [1], [0, 0, 1, 1], [], []>} : vector<32x32xbf16>, vector<32x8xbf16>, vector<32x8xf32> -> vector<32x8xf32>
    %c0_22 = arith.constant 0 : index
    %c2_23 = arith.constant 2 : index
    %c0_24 = arith.constant 0 : index
    %c0_25 = arith.constant 0 : index
    %21 = vector.load %arg4[%c0_22, %c2_23, %c0_24, %c0_25] : memref<1x3x1x8xf32, #tpu.memory_space<vmem>>, vector<1x1x1x8xf32>
    %22 = vector.shape_cast %21 : vector<1x1x1x8xf32> to vector<1x8xf32>
    %23 = vector.broadcast %22 : vector<1x8xf32> to vector<32x8xf32>
    %24 = arith.addf %20, %23 : vector<32x8xf32>
    %25 = arith.truncf %10 : vector<32x8xf32> to vector<32x8xbf16>
    %26 = arith.truncf %17 : vector<32x8xf32> to vector<32x8xbf16>
    %c0_26 = arith.constant 0 : index
    %c0_27 = arith.constant 0 : index
    %27 = vector.load %arg14[%c0_26, %c0_27] : memref<32x8xbf16, #tpu.memory_space<vmem>>, vector<32x8xbf16>
    tpu.vector_store %arg14[%c0_26, %c0_27], %26 {strides = array<i32>} : memref<32x8xbf16, #tpu.memory_space<vmem>>, vector<32x8xbf16>,
    %28 = arith.truncf %24 : vector<32x8xf32> to vector<32x8xbf16>
    %c0_28 = arith.constant 0 : index
    %c0_29 = arith.constant 0 : index
    %29 = vector.load %arg15[%c0_28, %c0_29] : memref<32x8xbf16, #tpu.memory_space<vmem>>, vector<32x8xbf16>
    tpu.vector_store %arg15[%c0_28, %c0_29], %28 {strides = array<i32>} : memref<32x8xbf16, #tpu.memory_space<vmem>>, vector<32x8xbf16>,
    %cst_30 = arith.constant 0xFF800000 : f32
    %30 = vector.broadcast %cst_30 : f32 to vector<32x1xf32>
    %cst_31 = arith.constant 0.000000e+00 : f32
    %31 = vector.broadcast %cst_31 : f32 to vector<32x1xf32>
    %cst_32 = arith.constant 0.000000e+00 : f32
    %32 = vector.broadcast %cst_32 : f32 to vector<32x8xf32>
    %c0_i32_33 = arith.constant 0 : i32
    %c16_i32 = arith.constant 16 : i32
    %33 = arith.muli %c0_i32_33, %c16_i32 : i32
    %34 = tpu.assume_multiple %33, 16 : i32
    %35 = arith.index_cast %34 : i32 to index
    %c0_34 = arith.constant 0 : index
    %36 = vector.load %arg14[%35, %c0_34] : memref<32x8xbf16, #tpu.memory_space<vmem>>, vector<16x8xbf16>
    %37 = arith.index_cast %34 : i32 to index
    %c0_35 = arith.constant 0 : index
    %38 = vector.load %arg15[%37, %c0_35] : memref<32x8xbf16, #tpu.memory_space<vmem>>, vector<16x8xbf16>
    %cst_36 = arith.constant dense<0.000000e+00> : vector<32x16xf32>
    %39 = tpu.matmul %25, %36, %cst_36 {dimension_numbers = #tpu.dot_dimension_numbers<[1], [1], [0], [0], [0, 0, 1, 0], [], []>} : vector<32x8xbf16>, vector<16x8xbf16>, vector<32x16xf32> -> vector<32x16xf32>
    %cst_37 = arith.constant dense<0xFF800000> : vector<32xf32>
    %40 = vector.multi_reduction <maximumf>, %39, %cst_37 [1] : vector<32x16xf32> to vector<32xf32>
    %41 = vector.shape_cast %40 : vector<32xf32> to vector<32x1xf32>
    %42 = arith.maximumf %30, %41 : vector<32x1xf32>
    %43 = arith.subf %30, %42 : vector<32x1xf32>
    %44 = math.exp %43 : vector<32x1xf32>
    %45 = vector.broadcast %42 : vector<32x1xf32> to vector<32x16xf32>
    %46 = arith.subf %39, %45 : vector<32x16xf32>
    %47 = math.exp %46 : vector<32x16xf32>
    %48 = arith.mulf %44, %31 : vector<32x1xf32>
    %cst_38 = arith.constant dense<0.000000e+00> : vector<32xf32>
    %49 = vector.multi_reduction <add>, %47, %cst_38 [1] : vector<32x16xf32> to vector<32xf32>
    %50 = vector.shape_cast %49 : vector<32xf32> to vector<32x1xf32>
    %51 = arith.addf %48, %50 : vector<32x1xf32>
    %52 = vector.broadcast %44 : vector<32x1xf32> to vector<32x8xf32>
    %53 = arith.mulf %52, %32 : vector<32x8xf32>
    %54 = arith.truncf %47 : vector<32x16xf32> to vector<32x16xbf16>
    %cst_39 = arith.constant dense<0.000000e+00> : vector<32x8xf32>
    %55 = tpu.matmul %54, %38, %cst_39 {dimension_numbers = #tpu.dot_dimension_numbers<[1], [0], [0], [1], [0, 0, 1, 1], [], []>} : vector<32x16xbf16>, vector<16x8xbf16>, vector<32x8xf32> -> vector<32x8xf32>
    %56 = arith.addf %53, %55 : vector<32x8xf32>
    %c1_i32 = arith.constant 1 : i32
    %c16_i32_40 = arith.constant 16 : i32
    %57 = arith.muli %c1_i32, %c16_i32_40 : i32
    %58 = tpu.assume_multiple %57, 16 : i32
    %59 = arith.index_cast %58 : i32 to index
    %c0_41 = arith.constant 0 : index
    %60 = vector.load %arg14[%59, %c0_41] : memref<32x8xbf16, #tpu.memory_space<vmem>>, vector<16x8xbf16>
    %61 = arith.index_cast %58 : i32 to index
    %c0_42 = arith.constant 0 : index
    %62 = vector.load %arg15[%61, %c0_42] : memref<32x8xbf16, #tpu.memory_space<vmem>>, vector<16x8xbf16>
    %cst_43 = arith.constant dense<0.000000e+00> : vector<32x16xf32>
    %63 = tpu.matmul %25, %60, %cst_43 {dimension_numbers = #tpu.dot_dimension_numbers<[1], [1], [0], [0], [0, 0, 1, 0], [], []>} : vector<32x8xbf16>, vector<16x8xbf16>, vector<32x16xf32> -> vector<32x16xf32>
    %cst_44 = arith.constant dense<0xFF800000> : vector<32xf32>
    %64 = vector.multi_reduction <maximumf>, %63, %cst_44 [1] : vector<32x16xf32> to vector<32xf32>
    %65 = vector.shape_cast %64 : vector<32xf32> to vector<32x1xf32>
    %66 = arith.maximumf %42, %65 : vector<32x1xf32>
    %67 = arith.subf %42, %66 : vector<32x1xf32>
    %68 = math.exp %67 : vector<32x1xf32>
    %69 = vector.broadcast %66 : vector<32x1xf32> to vector<32x16xf32>
    %70 = arith.subf %63, %69 : vector<32x16xf32>
    %71 = math.exp %70 : vector<32x16xf32>
    %72 = arith.mulf %68, %51 : vector<32x1xf32>
    %cst_45 = arith.constant dense<0.000000e+00> : vector<32xf32>
    %73 = vector.multi_reduction <add>, %71, %cst_45 [1] : vector<32x16xf32> to vector<32xf32>
    %74 = vector.shape_cast %73 : vector<32xf32> to vector<32x1xf32>
    %75 = arith.addf %72, %74 : vector<32x1xf32>
    %76 = vector.broadcast %68 : vector<32x1xf32> to vector<32x8xf32>
    %77 = arith.mulf %76, %56 : vector<32x8xf32>
    %78 = arith.truncf %71 : vector<32x16xf32> to vector<32x16xbf16>
    %cst_46 = arith.constant dense<0.000000e+00> : vector<32x8xf32>
    %79 = tpu.matmul %78, %62, %cst_46 {dimension_numbers = #tpu.dot_dimension_numbers<[1], [0], [0], [1], [0, 0, 1, 1], [], []>} : vector<32x16xbf16>, vector<16x8xbf16>, vector<32x8xf32> -> vector<32x8xf32>
    %80 = arith.addf %77, %79 : vector<32x8xf32>
    %c2_i32 = arith.constant 2 : i32
    %81 = tpu.reciprocal %75 {approx = true} : vector<32x1xf32> -> vector<32x1xf32>
    %82 = vector.broadcast %81 : vector<32x1xf32> to vector<32x8xf32>
    %83 = arith.mulf %80, %82 : vector<32x8xf32>
    %c0_47 = arith.constant 0 : index
    %c0_48 = arith.constant 0 : index
    %84 = vector.load %arg13[%c0_47, %c0_48] : memref<32x32xf32, #tpu.memory_space<vmem>>, vector<32x32xf32>
    %85 = arith.truncf %83 : vector<32x8xf32> to vector<32x8xbf16>
    %c0_49 = arith.constant 0 : index
    %c0_50 = arith.constant 0 : index
    %c0_51 = arith.constant 0 : index
    %86 = vector.load %arg5[%c0_49, %c0_50, %c0_51] : memref<1x8x32xbf16, #tpu.memory_space<vmem>>, vector<1x8x32xbf16>
    %87 = vector.shape_cast %86 : vector<1x8x32xbf16> to vector<8x32xbf16>
    %cst_52 = arith.constant dense<0.000000e+00> : vector<32x32xf32>
    %88 = tpu.matmul %85, %87, %cst_52 {dimension_numbers = #tpu.dot_dimension_numbers<[1], [0], [0], [1], [0, 0, 1, 1], [], []>} : vector<32x8xbf16>, vector<8x32xbf16>, vector<32x32xf32> -> vector<32x32xf32>
    %89 = arith.addf %84, %88 : vector<32x32xf32>
    %c0_53 = arith.constant 0 : index
    %c0_54 = arith.constant 0 : index
    %90 = vector.load %arg13[%c0_53, %c0_54] : memref<32x32xf32, #tpu.memory_space<vmem>>, vector<32x32xf32>
    tpu.vector_store %arg13[%c0_53, %c0_54], %89 {strides = array<i32>} : memref<32x32xf32, #tpu.memory_space<vmem>>, vector<32x32xf32>,
    %c3_i32 = arith.constant 3 : i32
    %91 = arith.cmpi eq, %arg1, %c3_i32 : i32
    %92 = arith.extui %91 : i1 to i32
    %c0_i32_55 = arith.constant 0 : i32
    %93 = arith.cmpi ne, %92, %c0_i32_55 : i32
    scf.if %93 {
      %c0_56 = arith.constant 0 : index
      %c0_57 = arith.constant 0 : index
      %94 = vector.load %arg13[%c0_56, %c0_57] : memref<32x32xf32, #tpu.memory_space<vmem>>, vector<32x32xf32>
      %cst_58 = arith.constant dense<0.000000e+00> : vector<32xf32>
      %95 = vector.multi_reduction <add>, %94, %cst_58 [1] : vector<32x32xf32> to vector<32xf32>
      %96 = vector.shape_cast %95 : vector<32xf32> to vector<32x1xf32>
      %cst_59 = arith.constant 3.200000e+01 : f32
      %97 = vector.broadcast %cst_59 : f32 to vector<32x1xf32>
      %98 = arith.divf %96, %97 : vector<32x1xf32>
      %99 = vector.broadcast %98 : vector<32x1xf32> to vector<32x32xf32>
      %100 = arith.subf %94, %99 : vector<32x32xf32>
      %101 = arith.mulf %100, %100 : vector<32x32xf32>
      %cst_60 = arith.constant dense<0.000000e+00> : vector<32xf32>
      %102 = vector.multi_reduction <add>, %101, %cst_60 [1] : vector<32x32xf32> to vector<32xf32>
      %103 = vector.shape_cast %102 : vector<32xf32> to vector<32x1xf32>
      %cst_61 = arith.constant 3.200000e+01 : f32
      %104 = vector.broadcast %cst_61 : f32 to vector<32x1xf32>
      %105 = arith.divf %103, %104 : vector<32x1xf32>
      %106 = vector.broadcast %98 : vector<32x1xf32> to vector<32x32xf32>
      %107 = arith.subf %94, %106 : vector<32x32xf32>
      %cst_62 = arith.constant 9.99999974E-6 : f32
      %108 = vector.broadcast %cst_62 : f32 to vector<32x1xf32>
      %109 = arith.addf %105, %108 : vector<32x1xf32>
      %110 = math.rsqrt %109 : vector<32x1xf32>
      %111 = vector.broadcast %110 : vector<32x1xf32> to vector<32x32xf32>
      %112 = arith.mulf %107, %111 : vector<32x32xf32>
      %c0_63 = arith.constant 0 : index
      %c0_64 = arith.constant 0 : index
      %113 = vector.load %arg7[%c0_63, %c0_64] : memref<1x32xf32, #tpu.memory_space<vmem>>, vector<1x32xf32>
      %114 = vector.broadcast %113 : vector<1x32xf32> to vector<32x32xf32>
      %115 = arith.mulf %112, %114 : vector<32x32xf32>
      %c0_65 = arith.constant 0 : index
      %c0_66 = arith.constant 0 : index
      %116 = vector.load %arg8[%c0_65, %c0_66] : memref<1x32xf32, #tpu.memory_space<vmem>>, vector<1x32xf32>
      %117 = vector.broadcast %116 : vector<1x32xf32> to vector<32x32xf32>
      %118 = arith.addf %115, %117 : vector<32x32xf32>
      %c0_67 = arith.constant 0 : index
      %c0_68 = arith.constant 0 : index
      %119 = vector.load %arg9[%c0_67, %c0_68] : memref<8x32xbf16, #tpu.memory_space<vmem>>, vector<8x32xbf16>
      %120 = arith.truncf %118 : vector<32x32xf32> to vector<32x32xbf16>
      %cst_69 = arith.constant dense<0.000000e+00> : vector<8x32xf32>
      %121 = tpu.matmul %119, %120, %cst_69 {dimension_numbers = #tpu.dot_dimension_numbers<[1], [0], [0], [1], [0, 0, 1, 1], [], []>} : vector<8x32xbf16>, vector<32x32xbf16>, vector<8x32xf32> -> vector<8x32xf32>
      %c0_70 = arith.constant 0 : index
      %c0_71 = arith.constant 0 : index
      %122 = vector.load %arg10[%c0_70, %c0_71] : memref<8x1xf32, #tpu.memory_space<vmem>>, vector<8x1xf32>
      %123 = vector.broadcast %122 : vector<8x1xf32> to vector<8x32xf32>
      %124 = arith.addf %121, %123 : vector<8x32xf32>
      %c0_72 = arith.constant 0 : index
      %c0_73 = arith.constant 0 : index
      %c0_74 = arith.constant 0 : index
      %125 = vector.load %arg11[%c0_72, %c0_73, %c0_74] : memref<1x8x32xf32, #tpu.memory_space<vmem>>, vector<1x8x32xf32>
      %126 = vector.shape_cast %125 : vector<1x8x32xf32> to vector<8x32xf32>
      %127 = vector.shape_cast %124 : vector<8x32xf32> to vector<1x8x32xf32>
      tpu.vector_store %arg11[%c0_72, %c0_73, %c0_74], %127 {strides = array<i32>} : memref<1x8x32xf32, #tpu.memory_space<vmem>>, vector<1x8x32xf32>,
    } else {
    }
    return
  }
  func.func @transform_0(%arg0: i32, %arg1: i32) -> (i32, i32, i32) {
    %c0_i32 = arith.constant 0 : i32
    %c0_i32_0 = arith.constant 0 : i32
    %c0_i32_1 = arith.constant 0 : i32
    return %arg0, %c0_i32, %c0_i32_0 : i32, i32, i32
  }
  func.func @transform_1(%arg0: i32, %arg1: i32) -> (i32, i32, i32, i32) {
    %c0_i32 = arith.constant 0 : i32
    %c0_i32_0 = arith.constant 0 : i32
    %c0_i32_1 = arith.constant 0 : i32
    %c0_i32_2 = arith.constant 0 : i32
    return %arg1, %c0_i32, %c0_i32_0, %c0_i32_1 : i32, i32, i32, i32
  }
  func.func @transform_2(%arg0: i32, %arg1: i32) -> (i32, i32, i32, i32) {
    %c0_i32 = arith.constant 0 : i32
    %c0_i32_0 = arith.constant 0 : i32
    %c0_i32_1 = arith.constant 0 : i32
    %c0_i32_2 = arith.constant 0 : i32
    return %arg1, %c0_i32, %c0_i32_0, %c0_i32_1 : i32, i32, i32, i32
  }
  func.func @transform_3(%arg0: i32, %arg1: i32) -> (i32, i32, i32) {
    %c0_i32 = arith.constant 0 : i32
    %c0_i32_0 = arith.constant 0 : i32
    %c0_i32_1 = arith.constant 0 : i32
    return %arg1, %c0_i32, %c0_i32_0 : i32, i32, i32
  }
  func.func @transform_4(%arg0: i32, %arg1: i32) -> (i32, i32) {
    %c0_i32 = arith.constant 0 : i32
    %c0_i32_0 = arith.constant 0 : i32
    %c0_i32_1 = arith.constant 0 : i32
    return %c0_i32, %c0_i32_0 : i32, i32
  }
  func.func @transform_5(%arg0: i32, %arg1: i32) -> (i32, i32) {
    %c0_i32 = arith.constant 0 : i32
    %c0_i32_0 = arith.constant 0 : i32
    %c0_i32_1 = arith.constant 0 : i32
    return %c0_i32, %c0_i32_0 : i32, i32
  }
  func.func @transform_6(%arg0: i32, %arg1: i32) -> (i32, i32) {
    %c0_i32 = arith.constant 0 : i32
    %c0_i32_0 = arith.constant 0 : i32
    %c0_i32_1 = arith.constant 0 : i32
    return %c0_i32, %c0_i32_0 : i32, i32
  }
  func.func @transform_7(%arg0: i32, %arg1: i32) -> (i32, i32) {
    %c0_i32 = arith.constant 0 : i32
    %c0_i32_0 = arith.constant 0 : i32
    %c0_i32_1 = arith.constant 0 : i32
    return %c0_i32, %c0_i32_0 : i32, i32
  }
  func.func @transform_8(%arg0: i32, %arg1: i32) -> (i32, i32) {
    %c0_i32 = arith.constant 0 : i32
    %c0_i32_0 = arith.constant 0 : i32
    %c0_i32_1 = arith.constant 0 : i32
    return %c0_i32, %c0_i32_0 : i32, i32
  }
  func.func @transform_9(%arg0: i32, %arg1: i32) -> (i32, i32, i32) {
    %c0_i32 = arith.constant 0 : i32
    %c0_i32_0 = arith.constant 0 : i32
    %c0_i32_1 = arith.constant 0 : i32
    return %arg0, %c0_i32, %c0_i32_0 : i32, i32, i32
  }
}

</mosaic_0001>

<llo_original>
// kernel: tpu_custom_call.1
$region0: #{tpu_custom_call.1}
  #allocation0 [shape = 'u32[]', space=smem, size = 0x4, offset = 0x4, fixed_abs, tag = 'smem constant byte address 0x4 - core index']
  #allocation1 [shape = 'u32[144,128]{1,0:T(1,128)}', space=vmem, size = 0x12000, scoped, tag = 'internal scratch']
  #allocation2 [shape = 'bf16[32,32]{1,0:T(16,128)(2,1)}', space=vmem, size = 0x2000, scoped, tag = 'scratch operand']
  #allocation3 [shape = 'f32[32,32]{1,0:T(8,128)}', space=vmem, size = 0x4000, scoped, tag = 'scratch operand']
  #allocation4 [shape = 'bf16[32,8]{1,0:T(16,128)(2,1)}', space=vmem, size = 0x2000, scoped, tag = 'scratch operand']
  #allocation5 [shape = 'bf16[32,8]{1,0:T(16,128)(2,1)}', space=vmem, size = 0x2000, scoped, tag = 'scratch operand']
  %s0 = inlined_call_operand.vmem [shape: f32[2,32,32], index: 0, kind: input, shape index: {}]
  %s1 = inlined_call_operand.vmem [shape: bf16[4,3,32,8], index: 1, kind: input, shape index: {}]
  %s2 = inlined_call_operand.vmem [shape: f32[4,3,1,8], index: 2, kind: input, shape index: {}]
  %s3 = inlined_call_operand.vmem [shape: bf16[4,8,32], index: 3, kind: input, shape index: {}]
  %s4 = inlined_call_operand.vmem [shape: f32[1,32], index: 4, kind: input, shape index: {}]
  %s5 = inlined_call_operand.vmem [shape: f32[1,32], index: 5, kind: input, shape index: {}]
  %s6 = inlined_call_operand.vmem [shape: f32[1,32], index: 6, kind: input, shape index: {}]
  %s7 = inlined_call_operand.vmem [shape: bf16[8,32], index: 7, kind: input, shape index: {}]
  %s8 = inlined_call_operand.vmem [shape: f32[8,1], index: 8, kind: input, shape index: {}]
  %s9 = inlined_call_operand.hbm [shape: f32[2,8,32], index: 9, kind: output, shape index: {}]
  %s10 = sld [smem:[#allocation0]]
  $region77: #{tpu_custom_call.1} parent=0
    _
  %s12 = ssub.s32 1, %s10
  %s13 = scalar_select 0, %s12, %s10
  $region1: #{tpu_custom_call.1} parent=0
    #allocation6 [shape = 'u8[8192]{0}', space=vmem, size = 0x2000, scoped, tag = 'output window, operand 0']
    #allocation7 [shape = 's32[2]{0}', space=sflag, size = 0x8, scoped, tag = 'scoped memory for tpu_custom_call.1']
    %14 = vsyncpa [#allocation7], 0
    %s15 = scalar_lea.sflag [#allocation7], 1
    %16 = vsyncpa %s15, 0
    loop: start=0, step=1, limit=10
    $region2: #{tpu_custom_call.1} parent=1 // loop_pre_header
      _
    $region3: #{tpu_custom_call.1} parent=1 // loop_header
      %s18 = sphi 0, %s22
      %p19 = scmp.ge.s32.totalorder %s18, 10
      %s25 = sphi 0, %s37
      %s26 = sphi 0, %s33
      %s27 = sphi 0, %s25
      %s28 = sphi 0, %s26
      %s29 = sphi 0, %s27
      %s30 = sphi 0, %s28
      %s40 = sphi 0, %s42
      %s43 = sphi 0, %s40
      %s44 = sphi 0, %s43
      %s60 = sphi 0, %s44
      %s66 = sphi 0, %s68
      %s69 = sphi 0, %s66
      %s70 = sphi 0, %s69
      %s86 = sphi 0, %s70
      %s92 = sphi 0, %s94
      %s95 = sphi 0, %s92
      %s96 = sphi 0, %s95
      %s112 = sphi 0, %s96
      %s118 = sphi 0, %s120
      %s121 = sphi 0, %s118
      %s122 = sphi 0, %s121
      %s138 = sphi 0, %s122
      %s142 = sphi 0, %s142
      %s144 = sphi 0, %s142
      %s145 = sphi 0, %s144
      %s159 = sphi 0, %s145
      %s163 = sphi 0, %s163
      %s165 = sphi 0, %s163
      %s166 = sphi 0, %s165
      %s180 = sphi 0, %s166
      %s184 = sphi 0, %s184
      %s186 = sphi 0, %s184
      %s187 = sphi 0, %s186
      %s201 = sphi 0, %s187
      %s205 = sphi 0, %s205
      %s207 = sphi 0, %s205
      %s208 = sphi 0, %s207
      %s222 = sphi 0, %s208
      %s226 = sphi 0, %s226
      %s228 = sphi 0, %s226
      %s229 = sphi 0, %s228
      %s243 = sphi 0, %s229
      %s249 = sphi 0, %s251
      %s252 = sphi 0, %s249
      %s253 = sphi 0, %s252
      %s269 = sphi 0, %s253
    $region4: #{tpu_custom_call.1} parent=1 // loop_header_branch
      %21 = sbr.rel (%p19) target = $region8
    $region5: #{tpu_custom_call.1} parent=1 // loop_body
      %s23 = ssub.s32 %s18, 1
      %s24 = ssub.s32 %s18, 2
      %s31 = sadd.s32 1, %s26
      %p32 = scmp.ge.s32.totalorder %s31, 4
      %s33 = scalar_select %p32, 0, %s31
      %s34 = sadd.s32 1, %s25
      %s35 = scalar_select %p32, %s34, %s25
      %p36 = scmp.ge.s32.totalorder %s35, 2
      %s37 = scalar_select %p36, 0, %s35
      %s38 = ssub.s32 %s25, %s37
      %p39 = scmp.eq.s32.totalorder %s38, 0
      %s41 = sadd.s32 %s40, 1
      %s42 = scalar_select %p39, %s40, %s41
      %p45 = pneg %p39
      %p46 = scmp.eq.s32.totalorder %s18, 7
      %p47 = por %p45, %p46
      %p48 = scmp.ne.s32.totalorder %s40, %s43
      %p49 = scmp.eq.s32.totalorder %s18, 0
      %p50 = por %p48, %p49
      %p51 = scmp.ne.s32.totalorder %s40, %s43
      %p52 = scmp.eq.s32.totalorder %s23, 7
      %p53 = por %p51, %p52
      %p54 = scmp.ne.s32.totalorder %s43, %s44
      %p55 = scmp.eq.s32.totalorder %s23, 0
      %p56 = por %p54, %p55
      %p57 = scmp.ne.s32.totalorder %s43, %s44
      %p58 = scmp.eq.s32.totalorder %s24, 7
      %p59 = por %p57, %p58
      %p61 = scmp.ne.s32.totalorder %s44, %s60
      %p62 = scmp.eq.s32.totalorder %s24, 0
      %p63 = por %p61, %p62
      %s64 = ssub.s32 %s26, %s33
      %p65 = scmp.eq.s32.totalorder %s64, 0
      %s67 = sadd.s32 %s66, 1
      %s68 = scalar_select %p65, %s66, %s67
      %p71 = pneg %p65
      %p72 = scmp.eq.s32.totalorder %s18, 7
      %p73 = por %p71, %p72
      %p74 = scmp.ne.s32.totalorder %s66, %s69
      %p75 = scmp.eq.s32.totalorder %s18, 0
      %p76 = por %p74, %p75
      %p77 = scmp.ne.s32.totalorder %s66, %s69
      %p78 = scmp.eq.s32.totalorder %s23, 7
      %p79 = por %p77, %p78
      %p80 = scmp.ne.s32.totalorder %s69, %s70
      %p81 = scmp.eq.s32.totalorder %s23, 0
      %p82 = por %p80, %p81
      %p83 = scmp.ne.s32.totalorder %s69, %s70
      %p84 = scmp.eq.s32.totalorder %s24, 7
      %p85 = por %p83, %p84
      %p87 = scmp.ne.s32.totalorder %s70, %s86
      %p88 = scmp.eq.s32.totalorder %s24, 0
      %p89 = por %p87, %p88
      %s90 = ssub.s32 %s26, %s33
      %p91 = scmp.eq.s32.totalorder %s90, 0
      %s93 = sadd.s32 %s92, 1
      %s94 = scalar_select %p91, %s92, %s93
      %p97 = pneg %p91
      %p98 = scmp.eq.s32.totalorder %s18, 7
      %p99 = por %p97, %p98
      %p100 = scmp.ne.s32.totalorder %s92, %s95
      %p101 = scmp.eq.s32.totalorder %s18, 0
      %p102 = por %p100, %p101
      %p103 = scmp.ne.s32.totalorder %s92, %s95
      %p104 = scmp.eq.s32.totalorder %s23, 7
      %p105 = por %p103, %p104
      %p106 = scmp.ne.s32.totalorder %s95, %s96
      %p107 = scmp.eq.s32.totalorder %s23, 0
      %p108 = por %p106, %p107
      %p109 = scmp.ne.s32.totalorder %s95, %s96
      %p110 = scmp.eq.s32.totalorder %s24, 7
      %p111 = por %p109, %p110
      %p113 = scmp.ne.s32.totalorder %s96, %s112
      %p114 = scmp.eq.s32.totalorder %s24, 0
      %p115 = por %p113, %p114
      %s116 = ssub.s32 %s26, %s33
      %p117 = scmp.eq.s32.totalorder %s116, 0
      %s119 = sadd.s32 %s118, 1
      %s120 = scalar_select %p117, %s118, %s119
      %p123 = pneg %p117
      %p124 = scmp.eq.s32.totalorder %s18, 7
      %p125 = por %p123, %p124
      %p126 = scmp.ne.s32.totalorder %s118, %s121
      %p127 = scmp.eq.s32.totalorder %s18, 0
      %p128 = por %p126, %p127
      %p129 = scmp.ne.s32.totalorder %s118, %s121
      %p130 = scmp.eq.s32.totalorder %s23, 7
      %p131 = por %p129, %p130
      %p132 = scmp.ne.s32.totalorder %s121, %s122
      %p133 = scmp.eq.s32.totalorder %s23, 0
      %p134 = por %p132, %p133
      %p135 = scmp.ne.s32.totalorder %s121, %s122
      %p136 = scmp.eq.s32.totalorder %s24, 7
      %p137 = por %p135, %p136
      %p139 = scmp.ne.s32.totalorder %s122, %s138
      %p140 = scmp.eq.s32.totalorder %s24, 0
      %p141 = por %p139, %p140
      %s143 = sadd.s32 %s142, 1
      %p146 = scmp.eq.s32.totalorder %s18, 7
      %p147 = scmp.ne.s32.totalorder %s142, %s144
      %p148 = scmp.eq.s32.totalorder %s18, 0
      %p149 = por %p147, %p148
      %p150 = scmp.ne.s32.totalorder %s142, %s144
      %p151 = scmp.eq.s32.totalorder %s23, 7
      %p152 = por %p150, %p151
      %p153 = scmp.ne.s32.totalorder %s144, %s145
      %p154 = scmp.eq.s32.totalorder %s23, 0
      %p155 = por %p153, %p154
      %p156 = scmp.ne.s32.totalorder %s144, %s145
      %p157 = scmp.eq.s32.totalorder %s24, 7
      %p158 = por %p156, %p157
      %p160 = scmp.ne.s32.totalorder %s145, %s159
      %p161 = scmp.eq.s32.totalorder %s24, 0
      %p162 = por %p160, %p161
      %s164 = sadd.s32 %s163, 1
      %p167 = scmp.eq.s32.totalorder %s18, 7
      %p168 = scmp.ne.s32.totalorder %s163, %s165
      %p169 = scmp.eq.s32.totalorder %s18, 0
      %p170 = por %p168, %p169
      %p171 = scmp.ne.s32.totalorder %s163, %s165
      %p172 = scmp.eq.s32.totalorder %s23, 7
      %p173 = por %p171, %p172
      %p174 = scmp.ne.s32.totalorder %s165, %s166
      %p175 = scmp.eq.s32.totalorder %s23, 0
      %p176 = por %p174, %p175
      %p177 = scmp.ne.s32.totalorder %s165, %s166
      %p178 = scmp.eq.s32.totalorder %s24, 7
      %p179 = por %p177, %p178
      %p181 = scmp.ne.s32.totalorder %s166, %s180
      %p182 = scmp.eq.s32.totalorder %s24, 0
      %p183 = por %p181, %p182
      %s185 = sadd.s32 %s184, 1
      %p188 = scmp.eq.s32.totalorder %s18, 7
      %p189 = scmp.ne.s32.totalorder %s184, %s186
      %p190 = scmp.eq.s32.totalorder %s18, 0
      %p191 = por %p189, %p190
      %p192 = scmp.ne.s32.totalorder %s184, %s186
      %p193 = scmp.eq.s32.totalorder %s23, 7
      %p194 = por %p192, %p193
      %p195 = scmp.ne.s32.totalorder %s186, %s187
      %p196 = scmp.eq.s32.totalorder %s23, 0
      %p197 = por %p195, %p196
      %p198 = scmp.ne.s32.totalorder %s186, %s187
      %p199 = scmp.eq.s32.totalorder %s24, 7
      %p200 = por %p198, %p199
      %p202 = scmp.ne.s32.totalorder %s187, %s201
      %p203 = scmp.eq.s32.totalorder %s24, 0
      %p204 = por %p202, %p203
      %s206 = sadd.s32 %s205, 1
      %p209 = scmp.eq.s32.totalorder %s18, 7
      %p210 = scmp.ne.s32.totalorder %s205, %s207
      %p211 = scmp.eq.s32.totalorder %s18, 0
      %p212 = por %p210, %p211
      %p213 = scmp.ne.s32.totalorder %s205, %s207
      %p214 = scmp.eq.s32.totalorder %s23, 7
      %p215 = por %p213, %p214
      %p216 = scmp.ne.s32.totalorder %s207, %s208
      %p217 = scmp.eq.s32.totalorder %s23, 0
      %p218 = por %p216, %p217
      %p219 = scmp.ne.s32.totalorder %s207, %s208
      %p220 = scmp.eq.s32.totalorder %s24, 7
      %p221 = por %p219, %p220
      %p223 = scmp.ne.s32.totalorder %s208, %s222
      %p224 = scmp.eq.s32.totalorder %s24, 0
      %p225 = por %p223, %p224
      %s227 = sadd.s32 %s226, 1
      %p230 = scmp.eq.s32.totalorder %s18, 7
      %p231 = scmp.ne.s32.totalorder %s226, %s228
      %p232 = scmp.eq.s32.totalorder %s18, 0
      %p233 = por %p231, %p232
      %p234 = scmp.ne.s32.totalorder %s226, %s228
      %p235 = scmp.eq.s32.totalorder %s23, 7
      %p236 = por %p234, %p235
      %p237 = scmp.ne.s32.totalorder %s228, %s229
      %p238 = scmp.eq.s32.totalorder %s23, 0
      %p239 = por %p237, %p238
      %p240 = scmp.ne.s32.totalorder %s228, %s229
      %p241 = scmp.eq.s32.totalorder %s24, 7
      %p242 = por %p240, %p241
      %p244 = scmp.ne.s32.totalorder %s229, %s243
      %p245 = scmp.eq.s32.totalorder %s24, 0
      %p246 = por %p244, %p245
      %s247 = ssub.s32 %s25, %s37
      %p248 = scmp.eq.s32.totalorder %s247, 0
      %s250 = sadd.s32 %s249, 1
      %s251 = scalar_select %p248, %s249, %s250
      %p254 = pneg %p248
      %p255 = scmp.eq.s32.totalorder %s18, 7
      %p256 = por %p254, %p255
      %p257 = scmp.ne.s32.totalorder %s249, %s252
      %p258 = scmp.eq.s32.totalorder %s18, 0
      %p259 = por %p257, %p258
      %p260 = scmp.ne.s32.totalorder %s249, %s252
      %p261 = scmp.eq.s32.totalorder %s23, 7
      %p262 = por %p260, %p261
      %p263 = scmp.ne.s32.totalorder %s252, %s253
      %p264 = scmp.eq.s32.totalorder %s23, 0
      %p265 = por %p263, %p264
      %p266 = scmp.ne.s32.totalorder %s252, %s253
      %p267 = scmp.eq.s32.totalorder %s24, 7
      %p268 = por %p266, %p267
      %p270 = scmp.ne.s32.totalorder %s253, %s269
      %p271 = scmp.eq.s32.totalorder %s24, 0
      %p272 = por %p270, %p271
      %p273 = scmp.le.s32.totalorder 1, %s18
      %p274 = scmp.lt.s32.totalorder %s18, 9
      %p275 = pnand %p273, %p274
      %p276 = pneg %p275
      // Predicated region
      $region9: #{tpu_custom_call.1} parent=5 // pred_check
        _
      $region10: #{tpu_custom_call.1} parent=5 // pred_check_branch
        %278 = sbr.rel (%p275) target = $region12
      $region11: #{tpu_custom_call.1} parent=5 // pred_region
        %s279 = ssub.s32 %s18, 1
        // Predicated region
        $region13: #{tpu_custom_call.1} parent=11 // pred_check
          %p280 = pneg %p155
        $region14: #{tpu_custom_call.1} parent=11 // pred_check_branch
          %282 = sbr.rel (%p280) target = $region16
        $region15: #{tpu_custom_call.1} parent=11 // pred_region
          _
        $region16: #{tpu_custom_call.1} parent=11 // pred_fallthru
          _
        // Predicated region
        $region17: #{tpu_custom_call.1} parent=11 // pred_check
          %p283 = pneg %p176
        $region18: #{tpu_custom_call.1} parent=11 // pred_check_branch
          %285 = sbr.rel (%p283) target = $region20
        $region19: #{tpu_custom_call.1} parent=11 // pred_region
          _
        $region20: #{tpu_custom_call.1} parent=11 // pred_fallthru
          _
        // Predicated region
        $region21: #{tpu_custom_call.1} parent=11 // pred_check
          %p286 = pneg %p197
        $region22: #{tpu_custom_call.1} parent=11 // pred_check_branch
          %288 = sbr.rel (%p286) target = $region24
        $region23: #{tpu_custom_call.1} parent=11 // pred_region
          _
        $region24: #{tpu_custom_call.1} parent=11 // pred_fallthru
          _
        // Predicated region
        $region25: #{tpu_custom_call.1} parent=11 // pred_check
          %p289 = pneg %p218
        $region26: #{tpu_custom_call.1} parent=11 // pred_check_branch
          %291 = sbr.rel (%p289) target = $region28
        $region27: #{tpu_custom_call.1} parent=11 // pred_region
          _
        $region28: #{tpu_custom_call.1} parent=11 // pred_fallthru
          _
        // Predicated region
        $region29: #{tpu_custom_call.1} parent=11 // pred_check
          %p292 = pneg %p239
        $region30: #{tpu_custom_call.1} parent=11 // pred_check_branch
          %294 = sbr.rel (%p292) target = $region32
        $region31: #{tpu_custom_call.1} parent=11 // pred_region
          _
        $region32: #{tpu_custom_call.1} parent=11 // pred_fallthru
          _
      $region12: #{tpu_custom_call.1} parent=5 // pred_fallthru
        _
      %p295 = scmp.lt.s32.totalorder %s18, 8
      // Predicated region
      $region33: #{tpu_custom_call.1} parent=5 // pred_check
        %p296 = pneg %p295
      $region34: #{tpu_custom_call.1} parent=5 // pred_check_branch
        %298 = sbr.rel (%p296) target = $region36
      $region35: #{tpu_custom_call.1} parent=5 // pred_region
        // Predicated region
        $region37: #{tpu_custom_call.1} parent=35 // pred_check
          %p299 = pneg %p50
        $region38: #{tpu_custom_call.1} parent=35 // pred_check_branch
          %301 = sbr.rel (%p299) target = $region40
        $region39: #{tpu_custom_call.1} parent=35 // pred_region
          %p302 = scmp.lt.s32.totalorder %s25, 1
          %s303 = scalar_select %p302, %s25, 1
          %s304 = smul.addr %s303, 4
          %s305 = smul.addr %s304, 8
          %s306 = scalar_lea.vmem %s0, %s305
        $region40: #{tpu_custom_call.1} parent=35 // pred_fallthru
          _
        // Predicated region
        $region41: #{tpu_custom_call.1} parent=35 // pred_check
          %p307 = pneg %p76
        $region42: #{tpu_custom_call.1} parent=35 // pred_check_branch
          %309 = sbr.rel (%p307) target = $region44
        $region43: #{tpu_custom_call.1} parent=35 // pred_region
          %p310 = scmp.lt.s32.totalorder %s26, 3
          %s311 = scalar_select %p310, %s26, 3
          %s312 = smul.addr %s311, 12
          %s313 = smul.addr %s312, 4
          %s314 = scalar_lea.vmem %s1, %s313
        $region44: #{tpu_custom_call.1} parent=35 // pred_fallthru
          _
        // Predicated region
        $region45: #{tpu_custom_call.1} parent=35 // pred_check
          %p315 = pneg %p102
        $region46: #{tpu_custom_call.1} parent=35 // pred_check_branch
          %317 = sbr.rel (%p315) target = $region48
        $region47: #{tpu_custom_call.1} parent=35 // pred_region
          %p318 = scmp.lt.s32.totalorder %s26, 3
          %s319 = scalar_select %p318, %s26, 3
          %s320 = smul.addr %s319, 3
          %s321 = scalar_lea.vmem %s2, %s320
        $region48: #{tpu_custom_call.1} parent=35 // pred_fallthru
          _
        // Predicated region
        $region49: #{tpu_custom_call.1} parent=35 // pred_check
          %p322 = pneg %p128
        $region50: #{tpu_custom_call.1} parent=35 // pred_check_branch
          %324 = sbr.rel (%p322) target = $region52
        $region51: #{tpu_custom_call.1} parent=35 // pred_region
          %p325 = scmp.lt.s32.totalorder %s26, 3
          %s326 = scalar_select %p325, %s26, 3
          %s327 = smul.addr %s326, 4
          %s328 = scalar_lea.vmem %s3, %s327
        $region52: #{tpu_custom_call.1} parent=35 // pred_fallthru
          _
      $region36: #{tpu_custom_call.1} parent=5 // pred_fallthru
        _
      %p329 = scmp.le.s32.totalorder 1, %s18
      %p330 = scmp.lt.s32.totalorder %s18, 9
      %p331 = pnand %p329, %p330
      %p332 = pneg %p331
      // Predicated region
      $region53: #{tpu_custom_call.1} parent=5 // pred_check
        _
      $region54: #{tpu_custom_call.1} parent=5 // pred_check_branch
        %334 = sbr.rel (%p331) target = $region56
      $region55: #{tpu_custom_call.1} parent=5 // pred_region
        %s335 = ssub.s32 %s18, 1
        %p336 = scmp.lt.s32.totalorder %s27, 1
        %s337 = scalar_select %p336, %s27, 1
        %s338 = smul.addr %s337, 4
        %s339 = smul.addr %s338, 8
        %s340 = scalar_lea.vmem %s0, %s339
        %p341 = pneg %p56
        %p342 = pneg %p53
        %p343 = scmp.lt.s32.totalorder %s28, 3
        %s344 = scalar_select %p343, %s28, 3
        %s345 = smul.addr %s344, 12
        %s346 = smul.addr %s345, 4
        %s347 = scalar_lea.vmem %s1, %s346
        %p348 = pneg %p82
        %p349 = pneg %p79
        %p350 = scmp.lt.s32.totalorder %s28, 3
        %s351 = scalar_select %p350, %s28, 3
        %s352 = smul.addr %s351, 3
        %s353 = scalar_lea.vmem %s2, %s352
        %p354 = pneg %p108
        %p355 = pneg %p105
        %p356 = scmp.lt.s32.totalorder %s28, 3
        %s357 = scalar_select %p356, %s28, 3
        %s358 = smul.addr %s357, 4
        %s359 = scalar_lea.vmem %s3, %s358
        %p360 = pneg %p134
        %p361 = pneg %p131
        %p362 = pneg %p155
        %p363 = pneg %p152
        %p364 = pneg %p176
        %p365 = pneg %p173
        %p366 = pneg %p197
        %p367 = pneg %p194
        %p368 = pneg %p218
        %p369 = pneg %p215
        %p370 = pneg %p239
        %p371 = pneg %p236
        %p372 = pneg %p265
        %p373 = pneg %p262
        %s374 = sand.u32 %s252, 1
        %s375 = scalar_lea.sflag [#allocation7], %s374
        %s376 = sand.u32 %s252, 1
        %s377 = smul.addr %s376, 8
        %s378 = scalar_lea.vmem [#allocation6], %s377
        %p379 = scmp.lt.s32.totalorder %s27, 1
        %s380 = scalar_select %p379, %s27, 1
        %s381 = smul.addr %s380, 4
        %s382 = smul.addr %s381, 8
        %s383 = scalar_lea.vmem %s0, %s382
        %p384 = scmp.lt.s32.totalorder %s28, 3
        %s385 = scalar_select %p384, %s28, 3
        %s386 = smul.addr %s385, 12
        %s387 = smul.addr %s386, 4
        %s388 = scalar_lea.vmem %s1, %s387
        %p389 = scmp.lt.s32.totalorder %s28, 3
        %s390 = scalar_select %p389, %s28, 3
        %s391 = smul.addr %s390, 3
        %s392 = scalar_lea.vmem %s2, %s391
        %p393 = scmp.lt.s32.totalorder %s28, 3
        %s394 = scalar_select %p393, %s28, 3
        %s395 = smul.addr %s394, 4
        %s396 = scalar_lea.vmem %s3, %s395
        %p398 = scmp.eq.s32.totalorder %s28, 0
        // Predicated region
        $region57: #{tpu_custom_call.1} parent=55 // pred_check
          %p399 = pneg %p398
        $region58: #{tpu_custom_call.1} parent=55 // pred_check_branch
          %401 = sbr.rel (%p399) target = $region60
        $region59: #{tpu_custom_call.1} parent=55 // pred_region
          %v402 = vld [vmem:[%s383] sm:$0xff]
          %v403 = vld [vmem:[%s383 + $0x8] sm:$0xff]
          %v404 = vld [vmem:[%s383 + $0x10] sm:$0xff]
          %v405 = vld [vmem:[%s383 + $0x18] sm:$0xff]
          %v406 = vpack.c.bf16 %v403, %v402
          %v407 = vpack.c.bf16 %v405, %v404
          %vm408 = vcmask 261120
          %409 = vst.msk [vmem:[#allocation2] sm:$0xff] %vm408, %v406
          %410 = vst.msk [vmem:[#allocation2 + $0x8] sm:$0xff] %vm408, %v407
          %v411 = vld [vmem:[%s4] sm:$0x1]
          %v413 = vlaneseq
          %v414 = vshrl.u32 %v413, 7
          %v415 = vsub.s32 0, %v414
          %v416 = vrot.slane %v411, %v415
          %v418 = vadd.f32 %v416, 0.0
          %419 = vst.msk [vmem:[#allocation3] sm:$0xff] %vm408, %v418
          %420 = vst.msk [vmem:[#allocation3 + $0x8] sm:$0xff] %vm408, %v418
          %421 = vst.msk [vmem:[#allocation3 + $0x10] sm:$0xff] %vm408, %v418
          %422 = vst.msk [vmem:[#allocation3 + $0x18] sm:$0xff] %vm408, %v418
        $region60: #{tpu_custom_call.1} parent=55 // pred_fallthru
          _
        %v423 = vld [vmem:[#allocation2] sm:$0xff]
        %v424 = vld [vmem:[#allocation2 + $0x8] sm:$0xff]
        %v425 = vld [vmem:[%s388] sm:$0xf]
        %v426 = vld [vmem:[%s388 + $0x4] sm:$0xf]
        %v427 = vld [vmem:[%s388 + $0x8] sm:$0xf]
        %v428 = vld [vmem:[%s388 + $0xc] sm:$0xf]
        %v429 = vld [vmem:[%s392] sm:$0x1]
        %v431 = vlaneseq
        %v432 = vshrl.u32 %v431, 7
        %v433 = vsub.s32 0, %v432
        %v434 = vrot.slane %v429, %v433
        %v440 = vunpack.c.l.b16 %v425
        %v441 = vunpack.c.l.b16 %v426
        %v442 = vunpack.c.l.b16 %v427
        %v443 = vunpack.c.l.b16 %v428
        %v444 = vpack.c.b16 %v441, %v440
        %v445 = vpack.c.b16 %v443, %v442
        %vm448 = vcmask 261120
        %v450 = vsel %vm448, %v423, 0
        %v453 = vsel %vm448, %v424, 0
        %455 = vmatprep.subr.bf16.mxu0 0
        %456 = vmatpush1.bf16.msra.mxu0 %v444
        %457 = vmatprep.subr.bf16.mxu0 0
        %458 = vmatpush1.bf16.msra.mxu0 %v445
        %459 = vmatprep.subr.bf16.mxu0 0
        %460 = vmatpush1.bf16.msra.mxu0 0
        %461 = vmatprep.subr.bf16.mxu0 0
        %462 = vmatpush1.bf16.msra.mxu0 0
        %463 = vmatprep.subr.bf16.mxu0 0
        %464 = vmatpush1.bf16.msra.mxu0 0
        %465 = vmatprep.subr.bf16.mxu0 0
        %466 = vmatpush1.bf16.msra.mxu0 0
        %467 = vmatprep.subr.bf16.mxu0 0
        %468 = vmatpush1.bf16.msra.mxu0 0
        %469 = vmatprep.subr.bf16.mxu0 0
        %470 = vmatpush1.bf16.msra.mxu0 0
        %471 = vmatprep.subr.bf16.mxu0 0
        %472 = vmatpush1.bf16.msra.mxu0 0
        %473 = vmatprep.subr.bf16.mxu0 0
        %474 = vmatpush1.bf16.msra.mxu0 0
        %475 = vmatprep.subr.bf16.mxu0 0
        %476 = vmatpush1.bf16.msra.mxu0 0
        %477 = vmatprep.subr.bf16.mxu0 0
        %478 = vmatpush1.bf16.msra.mxu0 0
        %479 = vmatprep.subr.bf16.mxu0 0
        %480 = vmatpush1.bf16.msra.mxu0 0
        %481 = vmatprep.subr.bf16.mxu0 0
        %482 = vmatpush1.bf16.msra.mxu0 0
        %483 = vmatprep.subr.bf16.mxu0 0
        %484 = vmatpush1.bf16.msra.mxu0 0
        %485 = vmatprep.subr.bf16.mxu0 0
        %486 = vmatpush1.bf16.msra.mxu0 0
        %487 = vmatprep.mubr.bf16.mxu0 0
        %488 = vmatmul.mubr.bf16.gmra.mrb[0].mxu0 %v450
        %v489 = vpop.f32.mrb[0].mxu0
        %v490 = vadd.f32 %v434, %v489
        %v491 = vpop.f32.mrb[0].mxu0
        %v492 = vpop.f32.mrb[0].mxu0
        %v493 = vadd.f32 %v434, %v492
        %v494 = vpop.f32.mrb[0].mxu0
        %495 = vmatprep.mubr.bf16.mxu0 0
        %496 = vmatmul.mubr.bf16.gmra.mrb[0].mxu0 %v453
        %v497 = vpop.f32.mrb[0].mxu0
        %v498 = vadd.f32 %v434, %v497
        %v499 = vpop.f32.mrb[0].mxu0
        %v500 = vpop.f32.mrb[0].mxu0
        %v501 = vadd.f32 %v434, %v500
        %v502 = vpop.f32.mrb[0].mxu0
        %503 = vdwg.mxu0
        %s504 = scalar_lea.vmem %s388, 16
        %v505 = vld [vmem:[%s504] sm:$0xf]
        %v506 = vld [vmem:[%s504 + $0x4] sm:$0xf]
        %v507 = vld [vmem:[%s504 + $0x8] sm:$0xf]
        %v508 = vld [vmem:[%s504 + $0xc] sm:$0xf]
        %s509 = scalar_lea.vmem %s392, 1
        %v510 = vld [vmem:[%s509] sm:$0x1]
        %v512 = vlaneseq
        %v513 = vshrl.u32 %v512, 7
        %v514 = vsub.s32 0, %v513
        %v515 = vrot.slane %v510, %v514
        %v521 = vunpack.c.l.b16 %v505
        %v522 = vunpack.c.l.b16 %v506
        %v523 = vunpack.c.l.b16 %v507
        %v524 = vunpack.c.l.b16 %v508
        %v525 = vpack.c.b16 %v522, %v521
        %v526 = vpack.c.b16 %v524, %v523
        %529 = vmatprep.subr.bf16.mxu0 0
        %530 = vmatpush1.bf16.msra.mxu0 %v525
        %531 = vmatprep.subr.bf16.mxu0 0
        %532 = vmatpush1.bf16.msra.mxu0 %v526
        %533 = vmatprep.subr.bf16.mxu0 0
        %534 = vmatpush1.bf16.msra.mxu0 0
        %535 = vmatprep.subr.bf16.mxu0 0
        %536 = vmatpush1.bf16.msra.mxu0 0
        %537 = vmatprep.subr.bf16.mxu0 0
        %538 = vmatpush1.bf16.msra.mxu0 0
        %539 = vmatprep.subr.bf16.mxu0 0
        %540 = vmatpush1.bf16.msra.mxu0 0
        %541 = vmatprep.subr.bf16.mxu0 0
        %542 = vmatpush1.bf16.msra.mxu0 0
        %543 = vmatprep.subr.bf16.mxu0 0
        %544 = vmatpush1.bf16.msra.mxu0 0
        %545 = vmatprep.subr.bf16.mxu0 0
        %546 = vmatpush1.bf16.msra.mxu0 0
        %547 = vmatprep.subr.bf16.mxu0 0
        %548 = vmatpush1.bf16.msra.mxu0 0
        %549 = vmatprep.subr.bf16.mxu0 0
        %550 = vmatpush1.bf16.msra.mxu0 0
        %551 = vmatprep.subr.bf16.mxu0 0
        %552 = vmatpush1.bf16.msra.mxu0 0
        %553 = vmatprep.subr.bf16.mxu0 0
        %554 = vmatpush1.bf16.msra.mxu0 0
        %555 = vmatprep.subr.bf16.mxu0 0
        %556 = vmatpush1.bf16.msra.mxu0 0
        %557 = vmatprep.subr.bf16.mxu0 0
        %558 = vmatpush1.bf16.msra.mxu0 0
        %559 = vmatprep.subr.bf16.mxu0 0
        %560 = vmatpush1.bf16.msra.mxu0 0
        %561 = vmatprep.mubr.bf16.mxu0 0
        %562 = vmatmul.mubr.bf16.gmra.mrb[0].mxu0 %v450
        %v563 = vpop.f32.mrb[0].mxu0
        %v564 = vadd.f32 %v515, %v563
        %v565 = vpop.f32.mrb[0].mxu0
        %v566 = vpop.f32.mrb[0].mxu0
        %v567 = vadd.f32 %v515, %v566
        %v568 = vpop.f32.mrb[0].mxu0
        %569 = vmatprep.mubr.bf16.mxu0 0
        %570 = vmatmul.mubr.bf16.gmra.mrb[0].mxu0 %v453
        %v571 = vpop.f32.mrb[0].mxu0
        %v572 = vadd.f32 %v515, %v571
        %v573 = vpop.f32.mrb[0].mxu0
        %v574 = vpop.f32.mrb[0].mxu0
        %v575 = vadd.f32 %v515, %v574
        %v576 = vpop.f32.mrb[0].mxu0
        %577 = vdwg.mxu0
        %s578 = scalar_lea.vmem %s388, 32
        %v579 = vld [vmem:[%s578] sm:$0xf]
        %v580 = vld [vmem:[%s578 + $0x4] sm:$0xf]
        %v581 = vld [vmem:[%s578 + $0x8] sm:$0xf]
        %v582 = vld [vmem:[%s578 + $0xc] sm:$0xf]
        %s583 = scalar_lea.vmem %s392, 2
        %v584 = vld [vmem:[%s583] sm:$0x1]
        %v586 = vlaneseq
        %v587 = vshrl.u32 %v586, 7
        %v588 = vsub.s32 0, %v587
        %v589 = vrot.slane %v584, %v588
        %v595 = vunpack.c.l.b16 %v579
        %v596 = vunpack.c.l.b16 %v580
        %v597 = vunpack.c.l.b16 %v581
        %v598 = vunpack.c.l.b16 %v582
        %v599 = vpack.c.b16 %v596, %v595
        %v600 = vpack.c.b16 %v598, %v597
        %603 = vmatprep.subr.bf16.mxu0 0
        %604 = vmatpush1.bf16.msra.mxu0 %v599
        %605 = vmatprep.subr.bf16.mxu0 0
        %606 = vmatpush1.bf16.msra.mxu0 %v600
        %607 = vmatprep.subr.bf16.mxu0 0
        %608 = vmatpush1.bf16.msra.mxu0 0
        %609 = vmatprep.subr.bf16.mxu0 0
        %610 = vmatpush1.bf16.msra.mxu0 0
        %611 = vmatprep.subr.bf16.mxu0 0
        %612 = vmatpush1.bf16.msra.mxu0 0
        %613 = vmatprep.subr.bf16.mxu0 0
        %614 = vmatpush1.bf16.msra.mxu0 0
        %615 = vmatprep.subr.bf16.mxu0 0
        %616 = vmatpush1.bf16.msra.mxu0 0
        %617 = vmatprep.subr.bf16.mxu0 0
        %618 = vmatpush1.bf16.msra.mxu0 0
        %619 = vmatprep.subr.bf16.mxu0 0
        %620 = vmatpush1.bf16.msra.mxu0 0
        %621 = vmatprep.subr.bf16.mxu0 0
        %622 = vmatpush1.bf16.msra.mxu0 0
        %623 = vmatprep.subr.bf16.mxu0 0
        %624 = vmatpush1.bf16.msra.mxu0 0
        %625 = vmatprep.subr.bf16.mxu0 0
        %626 = vmatpush1.bf16.msra.mxu0 0
        %627 = vmatprep.subr.bf16.mxu0 0
        %628 = vmatpush1.bf16.msra.mxu0 0
        %629 = vmatprep.subr.bf16.mxu0 0
        %630 = vmatpush1.bf16.msra.mxu0 0
        %631 = vmatprep.subr.bf16.mxu0 0
        %632 = vmatpush1.bf16.msra.mxu0 0
        %633 = vmatprep.subr.bf16.mxu0 0
        %634 = vmatpush1.bf16.msra.mxu0 0
        %635 = vmatprep.mubr.bf16.mxu0 0
        %636 = vmatmul.mubr.bf16.gmra.mrb[0].mxu0 %v450
        %v637 = vpop.f32.mrb[0].mxu0
        %v638 = vadd.f32 %v589, %v637
        %v639 = vpop.f32.mrb[0].mxu0
        %v640 = vpop.f32.mrb[0].mxu0
        %v641 = vadd.f32 %v589, %v640
        %v642 = vpop.f32.mrb[0].mxu0
        %643 = vmatprep.mubr.bf16.mxu0 0
        %644 = vmatmul.mubr.bf16.gmra.mrb[0].mxu0 %v453
        %v645 = vpop.f32.mrb[0].mxu0
        %v646 = vadd.f32 %v589, %v645
        %v647 = vpop.f32.mrb[0].mxu0
        %v648 = vpop.f32.mrb[0].mxu0
        %v649 = vadd.f32 %v589, %v648
        %v650 = vpop.f32.mrb[0].mxu0
        %651 = vdwg.mxu0
        %v652 = vpack.c.bf16 %v493, %v490
        %v653 = vpack.c.bf16 %v501, %v498
        %v654 = vpack.c.bf16 %v567, %v564
        %v655 = vpack.c.bf16 %v575, %v572
        %vm656 = vcmask 64512
        %657 = vst.msk [vmem:[#allocation4] sm:$0xff] %vm656, %v654
        %658 = vst.msk [vmem:[#allocation4 + $0x8] sm:$0xff] %vm656, %v655
        %v659 = vpack.c.bf16 %v641, %v638
        %v660 = vpack.c.bf16 %v649, %v646
        %661 = vst.msk [vmem:[#allocation5] sm:$0xff] %vm656, %v659
        %662 = vst.msk [vmem:[#allocation5 + $0x8] sm:$0xff] %vm656, %v660
        %v663 = vld [vmem:[#allocation4] sm:$0xff]
        %v664 = vld [vmem:[#allocation5] sm:$0xff]
        %v666 = vsel %vm656, %v652, 0
        %v669 = vsel %vm656, %v653, 0
        %v672 = vsel %vm656, %v663, 0
        %674 = vmatprep.subr.bf16.mxu0 0
        %675 = vmatpush1.bf16.xpose.msra.mxu0 %v672
        %676 = vmatprep.subr.bf16.mxu0 0
        %677 = vmatpush1.bf16.xpose.msra.mxu0 0
        %678 = vmatprep.subr.bf16.mxu0 0
        %679 = vmatpush1.bf16.xpose.msra.mxu0 0
        %680 = vmatprep.subr.bf16.mxu0 0
        %681 = vmatpush1.bf16.xpose.msra.mxu0 0
        %682 = vmatprep.subr.bf16.mxu0 0
        %683 = vmatpush1.bf16.xpose.msra.mxu0 0
        %684 = vmatprep.subr.bf16.mxu0 0
        %685 = vmatpush1.bf16.xpose.msra.mxu0 0
        %686 = vmatprep.subr.bf16.mxu0 0
        %687 = vmatpush1.bf16.xpose.msra.mxu0 0
        %688 = vmatprep.subr.bf16.mxu0 0
        %689 = vmatpush1.bf16.xpose.msra.mxu0 0
        %690 = vmatprep.subr.bf16.mxu0 0
        %691 = vmatpush1.bf16.xpose.msra.mxu0 0
        %692 = vmatprep.subr.bf16.mxu0 0
        %693 = vmatpush1.bf16.xpose.msra.mxu0 0
        %694 = vmatprep.subr.bf16.mxu0 0
        %695 = vmatpush1.bf16.xpose.msra.mxu0 0
        %696 = vmatprep.subr.bf16.mxu0 0
        %697 = vmatpush1.bf16.xpose.msra.mxu0 0
        %698 = vmatprep.subr.bf16.mxu0 0
        %699 = vmatpush1.bf16.xpose.msra.mxu0 0
        %700 = vmatprep.subr.bf16.mxu0 0
        %701 = vmatpush1.bf16.xpose.msra.mxu0 0
        %702 = vmatprep.subr.bf16.mxu0 0
        %703 = vmatpush1.bf16.xpose.msra.mxu0 0
        %704 = vmatprep.subr.bf16.mxu0 0
        %705 = vmatpush1.bf16.xpose.msra.mxu0 0
        %706 = vmatprep.mubr.bf16.mxu0 0
        %707 = vmatmul.mubr.bf16.gmra.mrb[0].mxu0 %v666
        %v708 = vpop.f32.mrb[0].mxu0
        %v709 = vadd.f32 0.0, %v708
        %v710 = vpop.f32.mrb[0].mxu0
        %v711 = vpop.f32.mrb[0].mxu0
        %v712 = vadd.f32 0.0, %v711
        %v713 = vpop.f32.mrb[0].mxu0
        %714 = vmatprep.mubr.bf16.mxu0 0
        %715 = vmatmul.mubr.bf16.gmra.mrb[0].mxu0 %v669
        %v716 = vpop.f32.mrb[0].mxu0
        %v717 = vadd.f32 0.0, %v716
        %v718 = vpop.f32.mrb[0].mxu0
        %v719 = vpop.f32.mrb[0].mxu0
        %v720 = vadd.f32 0.0, %v719
        %v721 = vpop.f32.mrb[0].mxu0
        %722 = vdwg.mxu0
        %vm723 = vcmask 130048
        %v724 = vsel %vm723, %v709, -inf
        %725 = vmax.xlane.f32.xlu0 %v724
        %v726 = vpop.xlane.xlu0 %725
        %v727 = vsel %vm723, %v712, -inf
        %728 = vmax.xlane.f32.xlu0 %v727
        %v729 = vpop.xlane.xlu0 %728
        %v730 = vsel %vm723, %v717, -inf
        %731 = vmax.xlane.f32.xlu0 %v730
        %v732 = vpop.xlane.xlu0 %731
        %v733 = vsel %vm723, %v720, -inf
        %734 = vmax.xlane.f32.xlu0 %v733
        %v735 = vpop.xlane.xlu0 %734
        %v736 = vsub.f32 -inf, %v726
        %v737 = vsub.f32 -inf, %v729
        %v738 = vsub.f32 -inf, %v732
        %v739 = vsub.f32 -inf, %v735
        %v740 = vmul.f32 %v736, 1.442695
        %v741 = vpow.pop %v740
        %v742 = vmul.f32 %v737, 1.442695
        %v743 = vpow.pop %v742
        %v744 = vmul.f32 %v738, 1.442695
        %v745 = vpow.pop %v744
        %v746 = vmul.f32 %v739, 1.442695
        %v747 = vpow.pop %v746
        %v748 = vsub.f32 %v709, %v726
        %v749 = vsub.f32 %v712, %v729
        %v750 = vsub.f32 %v717, %v732
        %v751 = vsub.f32 %v720, %v735
        %v752 = vmul.f32 %v748, 1.442695
        %v753 = vpow.pop %v752
        %v754 = vmul.f32 %v749, 1.442695
        %v755 = vpow.pop %v754
        %v756 = vmul.f32 %v750, 1.442695
        %v757 = vpow.pop %v756
        %v758 = vmul.f32 %v751, 1.442695
        %v759 = vpow.pop %v758
        %v760 = vmul.f32 %v741, 0.0
        %v761 = vmul.f32 %v743, 0.0
        %v762 = vmul.f32 %v745, 0.0
        %v763 = vmul.f32 %v747, 0.0
        %v764 = vsel %vm723, %v753, 0.0
        %765 = vadd.xlane.f32.xlu0 %v764
        %v766 = vpop.xlane.xlu0 %765
        %v767 = vsel %vm723, %v755, 0.0
        %768 = vadd.xlane.f32.xlu0 %v767
        %v769 = vpop.xlane.xlu0 %768
        %v770 = vsel %vm723, %v757, 0.0
        %771 = vadd.xlane.f32.xlu0 %v770
        %v772 = vpop.xlane.xlu0 %771
        %v773 = vsel %vm723, %v759, 0.0
        %774 = vadd.xlane.f32.xlu0 %v773
        %v775 = vpop.xlane.xlu0 %774
        %v776 = vadd.f32 %v760, %v766
        %v777 = vadd.f32 %v761, %v769
        %v778 = vadd.f32 %v762, %v772
        %v779 = vadd.f32 %v763, %v775
        %v780 = vpack.c.bf16 %v755, %v753
        %v781 = vpack.c.bf16 %v759, %v757
        %v783 = vsel %vm723, %v780, 0
        %v786 = vsel %vm723, %v781, 0
        %788 = vmatprep.subr.bf16.mxu0 0
        %789 = vmatpush1.bf16.msra.mxu0 %v664
        %790 = vmatprep.subr.bf16.mxu0 0
        %791 = vmatpush1.bf16.msra.mxu0 0
        %792 = vmatprep.subr.bf16.mxu0 0
        %793 = vmatpush1.bf16.msra.mxu0 0
        %794 = vmatprep.subr.bf16.mxu0 0
        %795 = vmatpush1.bf16.msra.mxu0 0
        %796 = vmatprep.subr.bf16.mxu0 0
        %797 = vmatpush1.bf16.msra.mxu0 0
        %798 = vmatprep.subr.bf16.mxu0 0
        %799 = vmatpush1.bf16.msra.mxu0 0
        %800 = vmatprep.subr.bf16.mxu0 0
        %801 = vmatpush1.bf16.msra.mxu0 0
        %802 = vmatprep.subr.bf16.mxu0 0
        %803 = vmatpush1.bf16.msra.mxu0 0
        %804 = vmatprep.subr.bf16.mxu0 0
        %805 = vmatpush1.bf16.msra.mxu0 0
        %806 = vmatprep.subr.bf16.mxu0 0
        %807 = vmatpush1.bf16.msra.mxu0 0
        %808 = vmatprep.subr.bf16.mxu0 0
        %809 = vmatpush1.bf16.msra.mxu0 0
        %810 = vmatprep.subr.bf16.mxu0 0
        %811 = vmatpush1.bf16.msra.mxu0 0
        %812 = vmatprep.subr.bf16.mxu0 0
        %813 = vmatpush1.bf16.msra.mxu0 0
        %814 = vmatprep.subr.bf16.mxu0 0
        %815 = vmatpush1.bf16.msra.mxu0 0
        %816 = vmatprep.subr.bf16.mxu0 0
        %817 = vmatpush1.bf16.msra.mxu0 0
        %818 = vmatprep.subr.bf16.mxu0 0
        %819 = vmatpush1.bf16.msra.mxu0 0
        %820 = vmatprep.mubr.bf16.mxu0 0
        %821 = vmatmul.mubr.bf16.gmra.mrb[0].mxu0 %v783
        %v822 = vpop.f32.mrb[0].mxu0
        %v823 = vadd.f32 0.0, %v822
        %v824 = vpop.f32.mrb[0].mxu0
        %v825 = vpop.f32.mrb[0].mxu0
        %v826 = vadd.f32 0.0, %v825
        %v827 = vpop.f32.mrb[0].mxu0
        %828 = vmatprep.mubr.bf16.mxu0 0
        %829 = vmatmul.mubr.bf16.gmra.mrb[0].mxu0 %v786
        %v830 = vpop.f32.mrb[0].mxu0
        %v831 = vadd.f32 0.0, %v830
        %v832 = vpop.f32.mrb[0].mxu0
        %v833 = vpop.f32.mrb[0].mxu0
        %v834 = vadd.f32 0.0, %v833
        %v835 = vpop.f32.mrb[0].mxu0
        %836 = vdwg.mxu0
        %v837 = vadd.f32 %v760, %v823
        %v838 = vadd.f32 %v761, %v826
        %v839 = vadd.f32 %v762, %v831
        %v840 = vadd.f32 %v763, %v834
        %s841 = scalar_lea.vmem [#allocation4], 8
        %v842 = vld [vmem:[%s841] sm:$0xff]
        %s843 = scalar_lea.vmem [#allocation5], 8
        %v844 = vld [vmem:[%s843] sm:$0xff]
        %v846 = vsel %vm656, %v842, 0
        %848 = vmatprep.subr.bf16.mxu0 0
        %849 = vmatpush1.bf16.xpose.msra.mxu0 %v846
        %850 = vmatprep.subr.bf16.mxu0 0
        %851 = vmatpush1.bf16.xpose.msra.mxu0 0
        %852 = vmatprep.subr.bf16.mxu0 0
        %853 = vmatpush1.bf16.xpose.msra.mxu0 0
        %854 = vmatprep.subr.bf16.mxu0 0
        %855 = vmatpush1.bf16.xpose.msra.mxu0 0
        %856 = vmatprep.subr.bf16.mxu0 0
        %857 = vmatpush1.bf16.xpose.msra.mxu0 0
        %858 = vmatprep.subr.bf16.mxu0 0
        %859 = vmatpush1.bf16.xpose.msra.mxu0 0
        %860 = vmatprep.subr.bf16.mxu0 0
        %861 = vmatpush1.bf16.xpose.msra.mxu0 0
        %862 = vmatprep.subr.bf16.mxu0 0
        %863 = vmatpush1.bf16.xpose.msra.mxu0 0
        %864 = vmatprep.subr.bf16.mxu0 0
        %865 = vmatpush1.bf16.xpose.msra.mxu0 0
        %866 = vmatprep.subr.bf16.mxu0 0
        %867 = vmatpush1.bf16.xpose.msra.mxu0 0
        %868 = vmatprep.subr.bf16.mxu0 0
        %869 = vmatpush1.bf16.xpose.msra.mxu0 0
        %870 = vmatprep.subr.bf16.mxu0 0
        %871 = vmatpush1.bf16.xpose.msra.mxu0 0
        %872 = vmatprep.subr.bf16.mxu0 0
        %873 = vmatpush1.bf16.xpose.msra.mxu0 0
        %874 = vmatprep.subr.bf16.mxu0 0
        %875 = vmatpush1.bf16.xpose.msra.mxu0 0
        %876 = vmatprep.subr.bf16.mxu0 0
        %877 = vmatpush1.bf16.xpose.msra.mxu0 0
        %878 = vmatprep.subr.bf16.mxu0 0
        %879 = vmatpush1.bf16.xpose.msra.mxu0 0
        %880 = vmatprep.mubr.bf16.mxu0 0
        %881 = vmatmul.mubr.bf16.gmra.mrb[0].mxu0 %v666
        %v882 = vpop.f32.mrb[0].mxu0
        %v883 = vadd.f32 0.0, %v882
        %v884 = vpop.f32.mrb[0].mxu0
        %v885 = vpop.f32.mrb[0].mxu0
        %v886 = vadd.f32 0.0, %v885
        %v887 = vpop.f32.mrb[0].mxu0
        %888 = vmatprep.mubr.bf16.mxu0 0
        %889 = vmatmul.mubr.bf16.gmra.mrb[0].mxu0 %v669
        %v890 = vpop.f32.mrb[0].mxu0
        %v891 = vadd.f32 0.0, %v890
        %v892 = vpop.f32.mrb[0].mxu0
        %v893 = vpop.f32.mrb[0].mxu0
        %v894 = vadd.f32 0.0, %v893
        %v895 = vpop.f32.mrb[0].mxu0
        %896 = vdwg.mxu0
        %v897 = vsel %vm723, %v883, -inf
        %898 = vmax.xlane.f32.xlu0 %v897
        %v899 = vpop.xlane.xlu0 %898
        %v900 = vsel %vm723, %v886, -inf
        %901 = vmax.xlane.f32.xlu0 %v900
        %v902 = vpop.xlane.xlu0 %901
        %v903 = vsel %vm723, %v891, -inf
        %904 = vmax.xlane.f32.xlu0 %v903
        %v905 = vpop.xlane.xlu0 %904
        %v906 = vsel %vm723, %v894, -inf
        %907 = vmax.xlane.f32.xlu0 %v906
        %v908 = vpop.xlane.xlu0 %907
        %v909 = vmax.f32 %v726, %v899
        %v910 = vmax.f32 %v729, %v902
        %v911 = vmax.f32 %v732, %v905
        %v912 = vmax.f32 %v735, %v908
        %v913 = vsub.f32 %v726, %v909
        %v914 = vsub.f32 %v729, %v910
        %v915 = vsub.f32 %v732, %v911
        %v916 = vsub.f32 %v735, %v912
        %v917 = vmul.f32 %v913, 1.442695
        %v918 = vpow.pop %v917
        %v919 = vmul.f32 %v914, 1.442695
        %v920 = vpow.pop %v919
        %v921 = vmul.f32 %v915, 1.442695
        %v922 = vpow.pop %v921
        %v923 = vmul.f32 %v916, 1.442695
        %v924 = vpow.pop %v923
        %v925 = vsub.f32 %v883, %v909
        %v926 = vsub.f32 %v886, %v910
        %v927 = vsub.f32 %v891, %v911
        %v928 = vsub.f32 %v894, %v912
        %v929 = vmul.f32 %v925, 1.442695
        %v930 = vpow.pop %v929
        %v931 = vmul.f32 %v926, 1.442695
        %v932 = vpow.pop %v931
        %v933 = vmul.f32 %v927, 1.442695
        %v934 = vpow.pop %v933
        %v935 = vmul.f32 %v928, 1.442695
        %v936 = vpow.pop %v935
        %v937 = vmul.f32 %v918, %v776
        %v938 = vmul.f32 %v920, %v777
        %v939 = vmul.f32 %v922, %v778
        %v940 = vmul.f32 %v924, %v779
        %v941 = vsel %vm723, %v930, 0.0
        %942 = vadd.xlane.f32.xlu0 %v941
        %v943 = vpop.xlane.xlu0 %942
        %v944 = vsel %vm723, %v932, 0.0
        %945 = vadd.xlane.f32.xlu0 %v944
        %v946 = vpop.xlane.xlu0 %945
        %v947 = vsel %vm723, %v934, 0.0
        %948 = vadd.xlane.f32.xlu0 %v947
        %v949 = vpop.xlane.xlu0 %948
        %v950 = vsel %vm723, %v936, 0.0
        %951 = vadd.xlane.f32.xlu0 %v950
        %v952 = vpop.xlane.xlu0 %951
        %v953 = vadd.f32 %v937, %v943
        %v954 = vadd.f32 %v938, %v946
        %v955 = vadd.f32 %v939, %v949
        %v956 = vadd.f32 %v940, %v952
        %v957 = vmul.f32 %v918, %v837
        %v958 = vmul.f32 %v920, %v838
        %v959 = vmul.f32 %v922, %v839
        %v960 = vmul.f32 %v924, %v840
        %v961 = vpack.c.bf16 %v932, %v930
        %v962 = vpack.c.bf16 %v936, %v934
        %v964 = vsel %vm723, %v961, 0
        %v967 = vsel %vm723, %v962, 0
        %969 = vmatprep.subr.bf16.mxu0 0
        %970 = vmatpush1.bf16.msra.mxu0 %v844
        %971 = vmatprep.subr.bf16.mxu0 0
        %972 = vmatpush1.bf16.msra.mxu0 0
        %973 = vmatprep.subr.bf16.mxu0 0
        %974 = vmatpush1.bf16.msra.mxu0 0
        %975 = vmatprep.subr.bf16.mxu0 0
        %976 = vmatpush1.bf16.msra.mxu0 0
        %977 = vmatprep.subr.bf16.mxu0 0
        %978 = vmatpush1.bf16.msra.mxu0 0
        %979 = vmatprep.subr.bf16.mxu0 0
        %980 = vmatpush1.bf16.msra.mxu0 0
        %981 = vmatprep.subr.bf16.mxu0 0
        %982 = vmatpush1.bf16.msra.mxu0 0
        %983 = vmatprep.subr.bf16.mxu0 0
        %984 = vmatpush1.bf16.msra.mxu0 0
        %985 = vmatprep.subr.bf16.mxu0 0
        %986 = vmatpush1.bf16.msra.mxu0 0
        %987 = vmatprep.subr.bf16.mxu0 0
        %988 = vmatpush1.bf16.msra.mxu0 0
        %989 = vmatprep.subr.bf16.mxu0 0
        %990 = vmatpush1.bf16.msra.mxu0 0
        %991 = vmatprep.subr.bf16.mxu0 0
        %992 = vmatpush1.bf16.msra.mxu0 0
        %993 = vmatprep.subr.bf16.mxu0 0
        %994 = vmatpush1.bf16.msra.mxu0 0
        %995 = vmatprep.subr.bf16.mxu0 0
        %996 = vmatpush1.bf16.msra.mxu0 0
        %997 = vmatprep.subr.bf16.mxu0 0
        %998 = vmatpush1.bf16.msra.mxu0 0
        %999 = vmatprep.subr.bf16.mxu0 0
        %1000 = vmatpush1.bf16.msra.mxu0 0
        %1001 = vmatprep.mubr.bf16.mxu0 0
        %1002 = vmatmul.mubr.bf16.gmra.mrb[0].mxu0 %v964
        %v1003 = vpop.f32.mrb[0].mxu0
        %v1004 = vadd.f32 0.0, %v1003
        %v1005 = vpop.f32.mrb[0].mxu0
        %v1006 = vpop.f32.mrb[0].mxu0
        %v1007 = vadd.f32 0.0, %v1006
        %v1008 = vpop.f32.mrb[0].mxu0
        %1009 = vmatprep.mubr.bf16.mxu0 0
        %1010 = vmatmul.mubr.bf16.gmra.mrb[0].mxu0 %v967
        %v1011 = vpop.f32.mrb[0].mxu0
        %v1012 = vadd.f32 0.0, %v1011
        %v1013 = vpop.f32.mrb[0].mxu0
        %v1014 = vpop.f32.mrb[0].mxu0
        %v1015 = vadd.f32 0.0, %v1014
        %v1016 = vpop.f32.mrb[0].mxu0
        %1017 = vdwg.mxu0
        %v1018 = vadd.f32 %v957, %v1004
        %v1019 = vadd.f32 %v958, %v1007
        %v1020 = vadd.f32 %v959, %v1012
        %v1021 = vadd.f32 %v960, %v1015
        %v1022 = vrcp.pop %v953
        %v1023 = vrcp.pop %v954
        %v1024 = vrcp.pop %v955
        %v1025 = vrcp.pop %v956
        %v1026 = vmul.f32 %v1018, %v1022
        %v1027 = vmul.f32 %v1019, %v1023
        %v1028 = vmul.f32 %v1020, %v1024
        %v1029 = vmul.f32 %v1021, %v1025
        %v1030 = vld [vmem:[#allocation3] sm:$0xff]
        %v1031 = vld [vmem:[#allocation3 + $0x8] sm:$0xff]
        %v1032 = vld [vmem:[#allocation3 + $0x10] sm:$0xff]
        %v1033 = vld [vmem:[#allocation3 + $0x18] sm:$0xff]
        %v1034 = vpack.c.bf16 %v1027, %v1026
        %v1035 = vpack.c.bf16 %v1029, %v1028
        %v1036 = vld [vmem:[%s396] sm:$0xf]
        %v1038 = vsel %vm656, %v1034, 0
        %v1041 = vsel %vm656, %v1035, 0
        %vm1043 = vcmask 1043456
        %v1045 = vsel %vm1043, %v1036, 0
        %1047 = vmatprep.subr.bf16.mxu0 0
        %1048 = vmatpush1.bf16.msra.mxu0 %v1045
        %1049 = vmatprep.subr.bf16.mxu0 0
        %1050 = vmatpush1.bf16.msra.mxu0 0
        %1051 = vmatprep.subr.bf16.mxu0 0
        %1052 = vmatpush1.bf16.msra.mxu0 0
        %1053 = vmatprep.subr.bf16.mxu0 0
        %1054 = vmatpush1.bf16.msra.mxu0 0
        %1055 = vmatprep.subr.bf16.mxu0 0
        %1056 = vmatpush1.bf16.msra.mxu0 0
        %1057 = vmatprep.subr.bf16.mxu0 0
        %1058 = vmatpush1.bf16.msra.mxu0 0
        %1059 = vmatprep.subr.bf16.mxu0 0
        %1060 = vmatpush1.bf16.msra.mxu0 0
        %1061 = vmatprep.subr.bf16.mxu0 0
        %1062 = vmatpush1.bf16.msra.mxu0 0
        %1063 = vmatprep.subr.bf16.mxu0 0
        %1064 = vmatpush1.bf16.msra.mxu0 0
        %1065 = vmatprep.subr.bf16.mxu0 0
        %1066 = vmatpush1.bf16.msra.mxu0 0
        %1067 = vmatprep.subr.bf16.mxu0 0
        %1068 = vmatpush1.bf16.msra.mxu0 0
        %1069 = vmatprep.subr.bf16.mxu0 0
        %1070 = vmatpush1.bf16.msra.mxu0 0
        %1071 = vmatprep.subr.bf16.mxu0 0
        %1072 = vmatpush1.bf16.msra.mxu0 0
        %1073 = vmatprep.subr.bf16.mxu0 0
        %1074 = vmatpush1.bf16.msra.mxu0 0
        %1075 = vmatprep.subr.bf16.mxu0 0
        %1076 = vmatpush1.bf16.msra.mxu0 0
        %1077 = vmatprep.subr.bf16.mxu0 0
        %1078 = vmatpush1.bf16.msra.mxu0 0
        %1079 = vmatprep.mubr.bf16.mxu0 0
        %1080 = vmatmul.mubr.bf16.gmra.mrb[0].mxu0 %v1038
        %v1081 = vpop.f32.mrb[0].mxu0
        %v1082 = vadd.f32 0.0, %v1081
        %v1083 = vpop.f32.mrb[0].mxu0
        %v1084 = vpop.f32.mrb[0].mxu0
        %v1085 = vadd.f32 0.0, %v1084
        %v1086 = vpop.f32.mrb[0].mxu0
        %1087 = vmatprep.mubr.bf16.mxu0 0
        %1088 = vmatmul.mubr.bf16.gmra.mrb[0].mxu0 %v1041
        %v1089 = vpop.f32.mrb[0].mxu0
        %v1090 = vadd.f32 0.0, %v1089
        %v1091 = vpop.f32.mrb[0].mxu0
        %v1092 = vpop.f32.mrb[0].mxu0
        %v1093 = vadd.f32 0.0, %v1092
        %v1094 = vpop.f32.mrb[0].mxu0
        %1095 = vdwg.mxu0
        %v1096 = vadd.f32 %v1030, %v1082
        %v1097 = vadd.f32 %v1031, %v1085
        %v1098 = vadd.f32 %v1032, %v1090
        %v1099 = vadd.f32 %v1033, %v1093
        %1100 = vst.msk [vmem:[#allocation3] sm:$0xff] %vm448, %v1096
        %1101 = vst.msk [vmem:[#allocation3 + $0x8] sm:$0xff] %vm448, %v1097
        %1102 = vst.msk [vmem:[#allocation3 + $0x10] sm:$0xff] %vm448, %v1098
        %1103 = vst.msk [vmem:[#allocation3 + $0x18] sm:$0xff] %vm448, %v1099
        %p1104 = scmp.eq.s32.totalorder %s28, 3
        // Predicated region
        $region61: #{tpu_custom_call.1} parent=55 // pred_check
          %p1105 = pneg %p1104
        $region62: #{tpu_custom_call.1} parent=55 // pred_check_branch
          %1107 = sbr.rel (%p1105) target = $region64
        $region63: #{tpu_custom_call.1} parent=55 // pred_region
          %v1108 = vld [vmem:[#allocation3] sm:$0xff]
          %v1109 = vld [vmem:[#allocation3 + $0x8] sm:$0xff]
          %v1110 = vld [vmem:[#allocation3 + $0x10] sm:$0xff]
          %v1111 = vld [vmem:[#allocation3 + $0x18] sm:$0xff]
          %v1112 = vsel %vm448, %v1108, 0.0
          %1113 = vadd.xlane.f32.xlu0 %v1112
          %v1114 = vpop.xlane.xlu0 %1113
          %v1115 = vsel %vm448, %v1109, 0.0
          %1116 = vadd.xlane.f32.xlu0 %v1115
          %v1117 = vpop.xlane.xlu0 %1116
          %v1118 = vsel %vm448, %v1110, 0.0
          %1119 = vadd.xlane.f32.xlu0 %v1118
          %v1120 = vpop.xlane.xlu0 %1119
          %v1121 = vsel %vm448, %v1111, 0.0
          %1122 = vadd.xlane.f32.xlu0 %v1121
          %v1123 = vpop.xlane.xlu0 %1122
          %v1124 = vrcp.pop 32.0
          %v1125 = vmul.f32 %v1114, %v1124
          %v1126 = vmul.f32 %v1117, %v1124
          %v1127 = vmul.f32 %v1120, %v1124
          %v1128 = vmul.f32 %v1123, %v1124
          %v1129 = vsub.f32 %v1108, %v1125
          %v1130 = vsub.f32 %v1109, %v1126
          %v1131 = vsub.f32 %v1110, %v1127
          %v1132 = vsub.f32 %v1111, %v1128
          %v1133 = vmul.f32 %v1129, %v1129
          %v1134 = vmul.f32 %v1130, %v1130
          %v1135 = vmul.f32 %v1131, %v1131
          %v1136 = vmul.f32 %v1132, %v1132
          %v1137 = vsel %vm448, %v1133, 0.0
          %1138 = vadd.xlane.f32.xlu0 %v1137
          %v1139 = vpop.xlane.xlu0 %1138
          %v1140 = vsel %vm448, %v1134, 0.0
          %1141 = vadd.xlane.f32.xlu0 %v1140
          %v1142 = vpop.xlane.xlu0 %1141
          %v1143 = vsel %vm448, %v1135, 0.0
          %1144 = vadd.xlane.f32.xlu0 %v1143
          %v1145 = vpop.xlane.xlu0 %1144
          %v1146 = vsel %vm448, %v1136, 0.0
          %1147 = vadd.xlane.f32.xlu0 %v1146
          %v1148 = vpop.xlane.xlu0 %1147
          %v1149 = vmul.f32 %v1139, %v1124
          %v1150 = vmul.f32 %v1142, %v1124
          %v1151 = vmul.f32 %v1145, %v1124
          %v1152 = vmul.f32 %v1148, %v1124
          %v1153 = vadd.f32 %v1149, 1e-05
          %v1154 = vadd.f32 %v1150, 1e-05
          %v1155 = vadd.f32 %v1151, 1e-05
          %v1156 = vadd.f32 %v1152, 1e-05
          %v1157 = vrsqrt.pop %v1153
          %v1158 = vrsqrt.pop %v1154
          %v1159 = vrsqrt.pop %v1155
          %v1160 = vrsqrt.pop %v1156
          %v1161 = vmul.f32 %v1129, %v1157
          %v1162 = vmul.f32 %v1130, %v1158
          %v1163 = vmul.f32 %v1131, %v1159
          %v1164 = vmul.f32 %v1132, %v1160
          %v1165 = vld [vmem:[%s5] sm:$0x1]
          %v1167 = vlaneseq
          %v1168 = vshrl.u32 %v1167, 7
          %v1169 = vsub.s32 0, %v1168
          %v1170 = vrot.slane %v1165, %v1169
          %v1172 = vmul.f32 %v1161, %v1170
          %v1173 = vmul.f32 %v1162, %v1170
          %v1174 = vmul.f32 %v1163, %v1170
          %v1175 = vmul.f32 %v1164, %v1170
          %v1176 = vld [vmem:[%s6] sm:$0x1]
          %v1178 = vlaneseq
          %v1179 = vshrl.u32 %v1178, 7
          %v1180 = vsub.s32 0, %v1179
          %v1181 = vrot.slane %v1176, %v1180
          %v1183 = vadd.f32 %v1172, %v1181
          %v1184 = vadd.f32 %v1173, %v1181
          %v1185 = vadd.f32 %v1174, %v1181
          %v1186 = vadd.f32 %v1175, %v1181
          %v1187 = vld [vmem:[%s7] sm:$0xf]
          %v1188 = vpack.c.bf16 %v1184, %v1183
          %v1189 = vpack.c.bf16 %v1186, %v1185
          %v1190 = vld [vmem:[%s8] sm:$0xff]
          %1192 = vset.pattern.permute.xlu0 0
          %1193 = vperm.xlu0 %1192, %v1190
          %v1194 = vpop.permute.xlu0 %1193
          %v1197 = vsel %vm448, %v1187, 0
          %1199 = vmatprep.subr.bf16.mxu0 0
          %1200 = vmatpush1.bf16.msra.mxu0 %v1188
          %1201 = vmatprep.subr.bf16.mxu0 0
          %1202 = vmatpush1.bf16.msra.mxu0 %v1189
          %1203 = vmatprep.subr.bf16.mxu0 0
          %1204 = vmatpush1.bf16.msra.mxu0 0
          %1205 = vmatprep.subr.bf16.mxu0 0
          %1206 = vmatpush1.bf16.msra.mxu0 0
          %1207 = vmatprep.subr.bf16.mxu0 0
          %1208 = vmatpush1.bf16.msra.mxu0 0
          %1209 = vmatprep.subr.bf16.mxu0 0
          %1210 = vmatpush1.bf16.msra.mxu0 0
          %1211 = vmatprep.subr.bf16.mxu0 0
          %1212 = vmatpush1.bf16.msra.mxu0 0
          %1213 = vmatprep.subr.bf16.mxu0 0
          %1214 = vmatpush1.bf16.msra.mxu0 0
          %1215 = vmatprep.subr.bf16.mxu0 0
          %1216 = vmatpush1.bf16.msra.mxu0 0
          %1217 = vmatprep.subr.bf16.mxu0 0
          %1218 = vmatpush1.bf16.msra.mxu0 0
          %1219 = vmatprep.subr.bf16.mxu0 0
          %1220 = vmatpush1.bf16.msra.mxu0 0
          %1221 = vmatprep.subr.bf16.mxu0 0
          %1222 = vmatpush1.bf16.msra.mxu0 0
          %1223 = vmatprep.subr.bf16.mxu0 0
          %1224 = vmatpush1.bf16.msra.mxu0 0
          %1225 = vmatprep.subr.bf16.mxu0 0
          %1226 = vmatpush1.bf16.msra.mxu0 0
          %1227 = vmatprep.subr.bf16.mxu0 0
          %1228 = vmatpush1.bf16.msra.mxu0 0
          %1229 = vmatprep.subr.bf16.mxu0 0
          %1230 = vmatpush1.bf16.msra.mxu0 0
          %1231 = vmatprep.mubr.bf16.mxu0 0
          %1232 = vmatmul.mubr.bf16.gmra.mrb[0].mxu0 %v1197
          %v1233 = vpop.f32.mrb[0].mxu0
          %v1234 = vadd.f32 %v1194, %v1233
          %v1235 = vpop.f32.mrb[0].mxu0
          %v1236 = vpop.f32.mrb[0].mxu0
          %v1237 = vpop.f32.mrb[0].mxu0
          %1238 = vdwg.mxu0
          %1239 = vst.msk [vmem:[%s378] sm:$0xff] %vm448, %v1234
        $region64: #{tpu_custom_call.1} parent=55 // pred_fallthru
          _
        %s1240 = sand.u32 %s252, 1
        %s1241 = scalar_lea.sflag [#allocation7], %s1240
        %s1242 = sand.u32 %s252, 1
        %s1243 = smul.addr %s1242, 8
        %s1244 = scalar_lea.vmem [#allocation6], %s1243
        // Predicated region
        $region65: #{tpu_custom_call.1} parent=55 // pred_check
          %p1245 = pneg %p262
        $region66: #{tpu_custom_call.1} parent=55 // pred_check_branch
          %1247 = sbr.rel (%p1245) target = $region68
        $region67: #{tpu_custom_call.1} parent=55 // pred_region
          %s1249 = ssub.s32 128, 128
          %1250 = vsyncadd %s1241, %s1249
          %s1251 = smul.addr %s27, 128
          %s1252 = scalar_lea.hbm %s9, %s1251
          %s1254 = sshll.u32 %s1244, 4
          %s1255 = int_to_ptr.vmem [resolvable:$true] %s1254
          %1257 = dma.vmem_to_hbm [thread:$0]  %s1255, 128, %s1252, %s1241
        $region68: #{tpu_custom_call.1} parent=55 // pred_fallthru
          _
      $region56: #{tpu_custom_call.1} parent=5 // pred_fallthru
        _
      %p1258 = scmp.le.s32.totalorder 2, %s18
      // Predicated region
      $region69: #{tpu_custom_call.1} parent=5 // pred_check
        %p1259 = pneg %p1258
      $region70: #{tpu_custom_call.1} parent=5 // pred_check_branch
        %1261 = sbr.rel (%p1259) target = $region72
      $region71: #{tpu_custom_call.1} parent=5 // pred_region
        %s1262 = ssub.s32 %s18, 2
        // Predicated region
        $region73: #{tpu_custom_call.1} parent=71 // pred_check
          %p1263 = pneg %p268
        $region74: #{tpu_custom_call.1} parent=71 // pred_check_branch
          %1265 = sbr.rel (%p1263) target = $region76
        $region75: #{tpu_custom_call.1} parent=71 // pred_region
          %s1266 = sand.u32 %s253, 1
          %s1267 = scalar_lea.sflag [#allocation7], %s1266
          %s1268 = sand.u32 %s253, 1
          %s1269 = smul.addr %s1268, 8
          %s1270 = scalar_lea.vmem [#allocation6], %s1269
          %1271 = dma.done %s1267, 128
        $region76: #{tpu_custom_call.1} parent=71 // pred_fallthru
          _
      $region72: #{tpu_custom_call.1} parent=5 // pred_fallthru
        _
    $region6: #{tpu_custom_call.1} parent=1 // loop_footer
      %s22 = sadd.s32 1, %s18
    $region7: #{tpu_custom_call.1} parent=1 // loop_footer_branch
      %17 = sbr.rel target = $region3
    $region8: #{tpu_custom_call.1} parent=1 // loop_exit
      _
    %1272 = vsyncpa [#allocation7], 1
    %s1273 = scalar_lea.sflag [#allocation7], 1
    %1274 = vsyncpa %s1273, 1

</llo_original>
